<compile_context>
chip_gen: v7x
topology: tpu7x:2x2x1
jax: 0.10.0
libtpu: 0.0.40
codegen_flags: <defaults>
</compile_context>

<pallas_src>
import functools

import jax
import jax.numpy as jnp
from jax.experimental import pallas as pl
from jax.experimental.pallas import tpu as pltpu


_VMEM_SPEC = pl.BlockSpec(memory_space=pltpu.MemorySpace.VMEM)


# ----------------------------------------------------------------------------
# Fused forward kernel: everything in one pallas_call, all data in VMEM.
# ----------------------------------------------------------------------------
def _fused_forward_kernel(x_ref, w_ref, out_ref, occ1_ref, *, lay):
    f32 = jnp.float32

    def wget(name):
        r0, nr, nc = lay[name]                       # static python ints
        return w_ref[r0:r0 + nr, 0:nc]               # zero-cost static slice

    def dense(x, name, relu=True):
        y = (jnp.dot(x, wget(name + "_w"), preferred_element_type=f32)
             + wget(name + "_b"))
        return jnp.maximum(y, 0.0) if relu else y

    hw = x_ref.shape[0]
    q = hw // 4

    x = x_ref[...]                                   # (HW, Cin) ego rows only

    # encoder_m1 -> backbone_m1 ('spatial_features_2d'); aligner is identity.
    feat = dense(x, "enc")
    feat = dense(feat, "bb")

    # pyramid_backbone_m1.forward_single, level 0
    f0 = dense(feat, "pyr0")                         # (HW, C)

    # 2x2 average pool: quadrant-major rows -> mean of 4 contiguous slabs.
    f0p = 0.25 * (f0[0:q] + f0[q:2 * q] + f0[2 * q:3 * q] + f0[3 * q:4 * q])

    # pyramid level 1 + its occupancy head.
    f1 = dense(f0p, "pyr1")                          # (HW/4, 2C)
    occ1_ref[...] = dense(f1, "occ1", relu=False).astype(occ1_ref.dtype)

    # shrink_conv(concat([f0, up2x(f1)])) as a split matmul; the f1 half is
    # computed at HW/4 rows and row-tiled (nearest upsample in this layout).
    g1 = jnp.dot(f1, wget("shrink_w1"), preferred_element_type=f32)
    g1_up = jnp.concatenate([g1, g1, g1, g1], axis=0)          # (HW, in_head)
    shr = (jnp.dot(f0, wget("shrink_w0"), preferred_element_type=f32)
           + g1_up + wget("shrink_b"))
    shr = jnp.maximum(shr, 0.0)

    # fused cls|reg|dir heads + occ0 (split matmul) -> one lane-packed output.
    out = (jnp.dot(shr, wget("heads_w"), preferred_element_type=f32)
           + jnp.dot(f0, wget("occ0_w"), preferred_element_type=f32)
           + wget("headsocc_b"))
    out_ref[...] = out.astype(out_ref.dtype)


# ----------------------------------------------------------------------------
# Parameter packing (done once, outside jit).
# ----------------------------------------------------------------------------
def _pack_params(params, c_in, c_feat, in_head, anchor_number, num_bins):
    n_cls = anchor_number
    n_reg = 7 * anchor_number
    n_dir = num_bins * anchor_number
    n_heads = n_cls + n_reg + n_dir                  # 20
    n_fused = n_heads + 1                            # + occ0
    lane = max(2 * c_feat, in_head, c_feat, c_in, n_fused)

    f32 = jnp.float32
    # Fuse cls|reg|dir (+ a zero column for occ0) and occ0 (zero-padded on the
    # head columns) so the kernel does out = shr@heads_w + f0@occ0_w + b.
    heads_w = jnp.concatenate(
        [params["cls_w"], params["reg_w"], params["dir_w"],
         jnp.zeros((in_head, 1), f32)], axis=1)                # (in_head, 21)
    occ0_w = jnp.concatenate(
        [jnp.zeros((c_feat, n_heads), f32), params["occ0_w"]], axis=1)
    headsocc_b = jnp.concatenate(
        [params["cls_b"], params["reg_b"], params["dir_b"], params["occ0_b"]])
    # Split shrink conv weight for the split matmul (no (M, 3C) concat).
    shrink_w0 = params["shrink_w"][:c_feat]
    shrink_w1 = params["shrink_w"][c_feat:]

    entries = [
        ("enc_w", params["enc_w"]), ("enc_b", params["enc_b"]),
        ("bb_w", params["bb_w"]), ("bb_b", params["bb_b"]),
        ("pyr0_w", params["pyr0_w"]), ("pyr0_b", params["pyr0_b"]),
        ("pyr1_w", params["pyr1_w"]), ("pyr1_b", params["pyr1_b"]),
        ("occ1_w", params["occ1_w"]), ("occ1_b", params["occ1_b"]),
        ("shrink_w0", shrink_w0), ("shrink_w1", shrink_w1),
        ("shrink_b", params["shrink_b"]),
        ("heads_w", heads_w), ("occ0_w", occ0_w), ("headsocc_b", headsocc_b),
    ]

    layout = {}
    blocks = []
    row = 0
    for name, arr in entries:
        a = jnp.asarray(arr, f32)
        if a.ndim == 1:
            a = a.reshape(1, -1)
        nr, nc = a.shape
        nr_pad = -(-nr // 8) * 8                     # 8-row align every block
        a = jnp.pad(a, ((0, nr_pad - nr), (0, lane - nc)))
        layout[name] = (row, nr, nc)
        blocks.append(a)
        row += nr_pad
    w_pack = jnp.concatenate(blocks, axis=0)          # single weight buffer

    dims = dict(c_in=c_in, c_feat=c_feat, in_head=in_head,
                n_cls=n_cls, n_reg=n_reg, n_dir=n_dir,
                n_heads=n_heads, n_fused=n_fused)
    return layout, w_pack, dims


# ----------------------------------------------------------------------------
# Jitted forward wrapper.
# ----------------------------------------------------------------------------
def _make_forward(layout, dims):
    c_in = dims["c_in"]
    c_feat = dims["c_feat"]
    in_head = dims["in_head"]
    n_cls, n_reg = dims["n_cls"], dims["n_reg"]
    n_heads, n_fused = dims["n_heads"], dims["n_fused"]

    @jax.jit
    def fwd(x_nchw, w_pack):
        B, Cin, H, W = x_nchw.shape
        assert H % 2 == 0 and W % 2 == 0
        HW = H * W
        Qr = HW // 4

        # feature = feature[0:1] hoisted BEFORE the encoder (non-ego rows are
        # never used; exact in eval mode for these stand-ins).
        x_ego = x_nchw[0].astype(jnp.float32)                    # (Cin, H, W)
        # NCHW -> quadrant-major NHWC rows: row = q*Qr + p,
        # q = (h%2)*2 + (w%2), p = (h//2)*(W//2) + (w//2).
        xq = x_ego.reshape(Cin, H // 2, 2, W // 2, 2)
        xq = jnp.transpose(xq, (2, 4, 1, 3, 0)).reshape(HW, Cin)

        flops = 2 * (HW * c_in * c_feat                # enc
                     + 2 * HW * c_feat * c_feat        # bb + pyr0
                     + Qr * c_feat * (2 * c_feat)      # pyr1
                     + Qr * (2 * c_feat)               # occ1
                     + HW * c_feat * in_head           # shrink (f0 part)
                     + Qr * (2 * c_feat) * in_head     # shrink (f1 part)
                     + HW * in_head * n_fused          # heads
                     + HW * c_feat * n_fused)          # occ0 split
        bytes_acc = 4 * (HW * c_in + int(w_pack.size) + HW * n_fused + Qr)

        fused, occ1 = pl.pallas_call(
            functools.partial(_fused_forward_kernel, lay=layout),
            out_shape=(jax.ShapeDtypeStruct((HW, n_fused), jnp.float32),
                       jax.ShapeDtypeStruct((Qr, 1), jnp.float32)),
            in_specs=[_VMEM_SPEC, _VMEM_SPEC],
            out_specs=(_VMEM_SPEC, _VMEM_SPEC),
            compiler_params=pltpu.CompilerParams(
                vmem_limit_bytes=32 * 1024 * 1024),
            cost_estimate=pl.CostEstimate(
                flops=flops, transcendentals=0, bytes_accessed=bytes_acc),
        )(xq, w_pack)

        # Un-permute quadrant-major rows back to (H, W) and emit NCHW
        # (PyTorch-module output layout).
        y = fused.reshape(2, 2, H // 2, W // 2, n_fused)
        y = jnp.transpose(y, (2, 0, 3, 1, 4)).reshape(H, W, n_fused)
        y = jnp.transpose(y, (2, 0, 1))[None]                    # (1,21,H,W)

        cls_preds = y[:, :n_cls]
        reg_preds = y[:, n_cls:n_cls + n_reg]
        dir_preds = y[:, n_cls + n_reg:n_heads]
        occ0 = y[:, n_heads:n_fused]
        occ1 = occ1.reshape(1, 1, H // 2, W // 2)
        return cls_preds, reg_preds, dir_preds, occ0, occ1

    return fwd


class HomoPyramidSingleTPU:
    """Mirrors HomoPyramidSingle.forward with a single fused Pallas kernel."""

    def __init__(self, params, c_in=4, c_feat=32, in_head=32,
                 anchor_number=2, num_bins=2):
        self.layout, self.w_pack, self.dims = _pack_params(
            params, c_in, c_feat, in_head, anchor_number, num_bins)
        self._fwd = _make_forward(self.layout, self.dims)

    def __call__(self, x_nchw):
        output_dict = {"pyramid": "collab"}
        cls_preds, reg_preds, dir_preds, occ0, occ1 = self._fwd(
            x_nchw.astype(jnp.float32), self.w_pack)
        output_dict.update({
            "cls_preds": cls_preds,
            "reg_preds": reg_preds,
            "dir_preds": dir_preds,
            "occ_single_list": [occ0, occ1],
        })
        return output_dict


# ----------------------------------------------------------------------------
# Deterministic parameter construction (synthetic; shapes from the module)
# ----------------------------------------------------------------------------
def make_params(key, c_in=4, c_feat=32, in_head=32, anchor_number=2,
                num_bins=2):
    ks = jax.random.split(key, 20)
    s = 0.1

    def p(k, shape):
        return (s * jax.random.normal(k, shape)).astype(jnp.float32)

    return {
        # encoder_m1 (stand-in): c_in -> c_feat
        "enc_w": p(ks[0], (c_in, c_feat)), "enc_b": p(ks[1], (c_feat,)),
        # backbone_m1 (stand-in): c_feat -> c_feat (spatial_features_2d)
        "bb_w": p(ks[2], (c_feat, c_feat)), "bb_b": p(ks[3], (c_feat,)),
        # pyramid level 0 conv: c_feat -> c_feat
        "pyr0_w": p(ks[4], (c_feat, c_feat)), "pyr0_b": p(ks[5], (c_feat,)),
        # pyramid level 1 conv: c_feat -> 2*c_feat
        "pyr1_w": p(ks[6], (c_feat, 2 * c_feat)),
        "pyr1_b": p(ks[7], (2 * c_feat,)),
        # single (occupancy) heads per pyramid level -> 1 channel
        "occ0_w": p(ks[8], (c_feat, 1)), "occ0_b": p(ks[9], (1,)),
        "occ1_w": p(ks[10], (2 * c_feat, 1)), "occ1_b": p(ks[11], (1,)),
        # shrink_conv_m1: (c_feat + 2*c_feat) -> in_head
        "shrink_w": p(ks[12], (3 * c_feat, in_head)),
        "shrink_b": p(ks[13], (in_head,)),
        # cls / reg / dir heads (1x1 convs, exact)
        "cls_w": p(ks[14], (in_head, anchor_number)),
        "cls_b": p(ks[15], (anchor_number,)),
        "reg_w": p(ks[16], (in_head, 7 * anchor_number)),
        "reg_b": p(ks[17], (7 * anchor_number,)),
        "dir_w": p(ks[18], (in_head, num_bins * anchor_number)),
        "dir_b": p(ks[19], (num_bins * anchor_number,)),
    }


# ----------------------------------------------------------------------------
if __name__ == "__main__":
    key = jax.random.PRNGKey(0)
    k_x, k_p = jax.random.split(key)

    # data_dict['inputs_m1'] stand-in: (B=2, C=4, H=16, W=16) NCHW
    x = jax.random.normal(k_x, (2, 4, 16, 16), dtype=jnp.float32)
    params = make_params(k_p)

    model = HomoPyramidSingleTPU(params)
    out = model(x)

    jax.block_until_ready(out["cls_preds"])
    jax.block_until_ready(out["reg_preds"])
    jax.block_until_ready(out["dir_preds"])
    for o in out["occ_single_list"]:
        jax.block_until_ready(o)

    assert out["cls_preds"].shape == (1, 2, 16, 16)
    assert out["reg_preds"].shape == (1, 14, 16, 16)
    assert out["dir_preds"].shape == (1, 4, 16, 16)
    assert out["occ_single_list"][0].shape == (1, 1, 16, 16)
    assert out["occ_single_list"][1].shape == (1, 1, 8, 8)

    print("KERNEL_OK")
</pallas_src>

<mosaic_0001>
module attributes {stable_mosaic.version = 11 : i64} {
  func.func @_fused_forward_kernel(%arg0: memref<256x4xf32, #tpu.memory_space<vmem>>, %arg1: memref<384x64xf32, #tpu.memory_space<vmem>>, %arg2: memref<256x21xf32, #tpu.memory_space<vmem>>, %arg3: memref<64x1xf32, #tpu.memory_space<vmem>>) attributes {dimension_semantics = [], scalar_prefetch = 0 : i64, scratch_operands = 0 : i64, tpu.core_type = #tpu.core_type<tc>} {
    %c0 = arith.constant 0 : index
    %c0_0 = arith.constant 0 : index
    %0 = vector.load %arg0[%c0, %c0_0] : memref<256x4xf32, #tpu.memory_space<vmem>>, vector<256x4xf32>
    %c0_1 = arith.constant 0 : index
    %c0_2 = arith.constant 0 : index
    %1 = vector.load %arg1[%c0_1, %c0_2] : memref<384x64xf32, #tpu.memory_space<vmem>>, vector<4x32xf32>
    %cst = arith.constant dense<0.000000e+00> : vector<256x32xf32>
    %2 = tpu.matmul %0, %1, %cst {dimension_numbers = #tpu.dot_dimension_numbers<[1], [0], [0], [1], [0, 0, 1, 1], [], []>} : vector<256x4xf32>, vector<4x32xf32>, vector<256x32xf32> -> vector<256x32xf32>
    %c8 = arith.constant 8 : index
    %c0_3 = arith.constant 0 : index
    %3 = vector.load %arg1[%c8, %c0_3] : memref<384x64xf32, #tpu.memory_space<vmem>>, vector<1x32xf32>
    %4 = vector.broadcast %3 : vector<1x32xf32> to vector<256x32xf32>
    %5 = arith.addf %2, %4 : vector<256x32xf32>
    %cst_4 = arith.constant 0.000000e+00 : f32
    %6 = vector.broadcast %cst_4 : f32 to vector<256x32xf32>
    %7 = arith.maximumf %5, %6 : vector<256x32xf32>
    %c16 = arith.constant 16 : index
    %c0_5 = arith.constant 0 : index
    %8 = vector.load %arg1[%c16, %c0_5] : memref<384x64xf32, #tpu.memory_space<vmem>>, vector<32x32xf32>
    %cst_6 = arith.constant dense<0.000000e+00> : vector<256x32xf32>
    %9 = tpu.matmul %7, %8, %cst_6 {dimension_numbers = #tpu.dot_dimension_numbers<[1], [0], [0], [1], [0, 0, 1, 1], [], []>} : vector<256x32xf32>, vector<32x32xf32>, vector<256x32xf32> -> vector<256x32xf32>
    %c48 = arith.constant 48 : index
    %c0_7 = arith.constant 0 : index
    %10 = vector.load %arg1[%c48, %c0_7] : memref<384x64xf32, #tpu.memory_space<vmem>>, vector<1x32xf32>
    %11 = vector.broadcast %10 : vector<1x32xf32> to vector<256x32xf32>
    %12 = arith.addf %9, %11 : vector<256x32xf32>
    %cst_8 = arith.constant 0.000000e+00 : f32
    %13 = vector.broadcast %cst_8 : f32 to vector<256x32xf32>
    %14 = arith.maximumf %12, %13 : vector<256x32xf32>
    %c56 = arith.constant 56 : index
    %c0_9 = arith.constant 0 : index
    %15 = vector.load %arg1[%c56, %c0_9] : memref<384x64xf32, #tpu.memory_space<vmem>>, vector<32x32xf32>
    %cst_10 = arith.constant dense<0.000000e+00> : vector<256x32xf32>
    %16 = tpu.matmul %14, %15, %cst_10 {dimension_numbers = #tpu.dot_dimension_numbers<[1], [0], [0], [1], [0, 0, 1, 1], [], []>} : vector<256x32xf32>, vector<32x32xf32>, vector<256x32xf32> -> vector<256x32xf32>
    %c88 = arith.constant 88 : index
    %c0_11 = arith.constant 0 : index
    %17 = vector.load %arg1[%c88, %c0_11] : memref<384x64xf32, #tpu.memory_space<vmem>>, vector<1x32xf32>
    %18 = vector.broadcast %17 : vector<1x32xf32> to vector<256x32xf32>
    %19 = arith.addf %16, %18 : vector<256x32xf32>
    %cst_12 = arith.constant 0.000000e+00 : f32
    %20 = vector.broadcast %cst_12 : f32 to vector<256x32xf32>
    %21 = arith.maximumf %19, %20 : vector<256x32xf32>
    %22 = vector.extract_strided_slice %21 {offsets = [0, 0], sizes = [64, 32], strides = [1, 1]} : vector<256x32xf32> to vector<64x32xf32>
    %23 = vector.extract_strided_slice %21 {offsets = [64, 0], sizes = [64, 32], strides = [1, 1]} : vector<256x32xf32> to vector<64x32xf32>
    %24 = arith.addf %22, %23 : vector<64x32xf32>
    %25 = vector.extract_strided_slice %21 {offsets = [128, 0], sizes = [64, 32], strides = [1, 1]} : vector<256x32xf32> to vector<64x32xf32>
    %26 = arith.addf %24, %25 : vector<64x32xf32>
    %27 = vector.extract_strided_slice %21 {offsets = [192, 0], sizes = [64, 32], strides = [1, 1]} : vector<256x32xf32> to vector<64x32xf32>
    %28 = arith.addf %26, %27 : vector<64x32xf32>
    %cst_13 = arith.constant 2.500000e-01 : f32
    %29 = vector.broadcast %cst_13 : f32 to vector<64x32xf32>
    %30 = arith.mulf %29, %28 : vector<64x32xf32>
    %c96 = arith.constant 96 : index
    %c0_14 = arith.constant 0 : index
    %31 = vector.load %arg1[%c96, %c0_14] : memref<384x64xf32, #tpu.memory_space<vmem>>, vector<32x64xf32>
    %cst_15 = arith.constant dense<0.000000e+00> : vector<64x64xf32>
    %32 = tpu.matmul %30, %31, %cst_15 {dimension_numbers = #tpu.dot_dimension_numbers<[1], [0], [0], [1], [0, 0, 1, 1], [], []>} : vector<64x32xf32>, vector<32x64xf32>, vector<64x64xf32> -> vector<64x64xf32>
    %c128 = arith.constant 128 : index
    %c0_16 = arith.constant 0 : index
    %33 = vector.load %arg1[%c128, %c0_16] : memref<384x64xf32, #tpu.memory_space<vmem>>, vector<1x64xf32>
    %34 = vector.broadcast %33 : vector<1x64xf32> to vector<64x64xf32>
    %35 = arith.addf %32, %34 : vector<64x64xf32>
    %cst_17 = arith.constant 0.000000e+00 : f32
    %36 = vector.broadcast %cst_17 : f32 to vector<64x64xf32>
    %37 = arith.maximumf %35, %36 : vector<64x64xf32>
    %c136 = arith.constant 136 : index
    %c0_18 = arith.constant 0 : index
    %38 = vector.load %arg1[%c136, %c0_18] : memref<384x64xf32, #tpu.memory_space<vmem>>, vector<64x1xf32>
    %cst_19 = arith.constant dense<0.000000e+00> : vector<64x1xf32>
    %39 = tpu.matmul %37, %38, %cst_19 {dimension_numbers = #tpu.dot_dimension_numbers<[1], [0], [0], [1], [0, 0, 1, 1], [], []>} : vector<64x64xf32>, vector<64x1xf32>, vector<64x1xf32> -> vector<64x1xf32>
    %c200 = arith.constant 200 : index
    %c0_20 = arith.constant 0 : index
    %40 = vector.load %arg1[%c200, %c0_20] : memref<384x64xf32, #tpu.memory_space<vmem>>, vector<1x1xf32>
    %41 = vector.broadcast %40 : vector<1x1xf32> to vector<64x1xf32>
    %42 = arith.addf %39, %41 : vector<64x1xf32>
    %c0_21 = arith.constant 0 : index
    %c0_22 = arith.constant 0 : index
    %43 = vector.load %arg3[%c0_21, %c0_22] : memref<64x1xf32, #tpu.memory_space<vmem>>, vector<64x1xf32>
    tpu.vector_store %arg3[%c0_21, %c0_22], %42 {strides = array<i32>} : memref<64x1xf32, #tpu.memory_space<vmem>>, vector<64x1xf32>,
    %c240 = arith.constant 240 : index
    %c0_23 = arith.constant 0 : index
    %44 = vector.load %arg1[%c240, %c0_23] : memref<384x64xf32, #tpu.memory_space<vmem>>, vector<64x32xf32>
    %cst_24 = arith.constant dense<0.000000e+00> : vector<64x32xf32>
    %45 = tpu.matmul %37, %44, %cst_24 {dimension_numbers = #tpu.dot_dimension_numbers<[1], [0], [0], [1], [0, 0, 1, 1], [], []>} : vector<64x64xf32>, vector<64x32xf32>, vector<64x32xf32> -> vector<64x32xf32>
    %46 = tpu.concatenate %45, %45, %45, %45 in 0 : vector<64x32xf32>, vector<64x32xf32>, vector<64x32xf32>, vector<64x32xf32> -> vector<256x32xf32>
    %c208 = arith.constant 208 : index
    %c0_25 = arith.constant 0 : index
    %47 = vector.load %arg1[%c208, %c0_25] : memref<384x64xf32, #tpu.memory_space<vmem>>, vector<32x32xf32>
    %cst_26 = arith.constant dense<0.000000e+00> : vector<256x32xf32>
    %48 = tpu.matmul %21, %47, %cst_26 {dimension_numbers = #tpu.dot_dimension_numbers<[1], [0], [0], [1], [0, 0, 1, 1], [], []>} : vector<256x32xf32>, vector<32x32xf32>, vector<256x32xf32> -> vector<256x32xf32>
    %49 = arith.addf %48, %46 : vector<256x32xf32>
    %c304 = arith.constant 304 : index
    %c0_27 = arith.constant 0 : index
    %50 = vector.load %arg1[%c304, %c0_27] : memref<384x64xf32, #tpu.memory_space<vmem>>, vector<1x32xf32>
    %51 = vector.broadcast %50 : vector<1x32xf32> to vector<256x32xf32>
    %52 = arith.addf %49, %51 : vector<256x32xf32>
    %cst_28 = arith.constant 0.000000e+00 : f32
    %53 = vector.broadcast %cst_28 : f32 to vector<256x32xf32>
    %54 = arith.maximumf %52, %53 : vector<256x32xf32>
    %c312 = arith.constant 312 : index
    %c0_29 = arith.constant 0 : index
    %55 = vector.load %arg1[%c312, %c0_29] : memref<384x64xf32, #tpu.memory_space<vmem>>, vector<32x21xf32>
    %cst_30 = arith.constant dense<0.000000e+00> : vector<256x21xf32>
    %56 = tpu.matmul %54, %55, %cst_30 {dimension_numbers = #tpu.dot_dimension_numbers<[1], [0], [0], [1], [0, 0, 1, 1], [], []>} : vector<256x32xf32>, vector<32x21xf32>, vector<256x21xf32> -> vector<256x21xf32>
    %c344 = arith.constant 344 : index
    %c0_31 = arith.constant 0 : index
    %57 = vector.load %arg1[%c344, %c0_31] : memref<384x64xf32, #tpu.memory_space<vmem>>, vector<32x21xf32>
    %cst_32 = arith.constant dense<0.000000e+00> : vector<256x21xf32>
    %58 = tpu.matmul %21, %57, %cst_32 {dimension_numbers = #tpu.dot_dimension_numbers<[1], [0], [0], [1], [0, 0, 1, 1], [], []>} : vector<256x32xf32>, vector<32x21xf32>, vector<256x21xf32> -> vector<256x21xf32>
    %59 = arith.addf %56, %58 : vector<256x21xf32>
    %c376 = arith.constant 376 : index
    %c0_33 = arith.constant 0 : index
    %60 = vector.load %arg1[%c376, %c0_33] : memref<384x64xf32, #tpu.memory_space<vmem>>, vector<1x21xf32>
    %61 = vector.broadcast %60 : vector<1x21xf32> to vector<256x21xf32>
    %62 = arith.addf %59, %61 : vector<256x21xf32>
    %c0_34 = arith.constant 0 : index
    %c0_35 = arith.constant 0 : index
    %63 = vector.load %arg2[%c0_34, %c0_35] : memref<256x21xf32, #tpu.memory_space<vmem>>, vector<256x21xf32>
    tpu.vector_store %arg2[%c0_34, %c0_35], %62 {strides = array<i32>} : memref<256x21xf32, #tpu.memory_space<vmem>>, vector<256x21xf32>,
    return
  }
}

</mosaic_0001>

<llo_original>
// kernel: fwd.1
$region0: #{fwd.1}
  #allocation0 [shape = 'u32[]', space=smem, size = 0x4, offset = 0x4, fixed_abs, tag = 'smem constant byte address 0x4 - core index']
  #allocation1 [shape = 'u32[144,128]{1,0:T(1,128)}', space=vmem, size = 0x12000, scoped, tag = 'internal scratch']
  %s0 = inlined_call_operand.vmem [shape: f32[256,4], index: 0, kind: input, shape index: {}]
  %s1 = inlined_call_operand.vmem [shape: f32[384,64], index: 1, kind: input, shape index: {}]
  %s2 = inlined_call_operand.vmem [shape: f32[256,21], index: 2, kind: output, shape index: {0}]
  %s3 = inlined_call_operand.vmem [shape: f32[64,1], index: 3, kind: output, shape index: {1}]
  %4 = xla_tuple %s2, %s3
  %s5 = sld [smem:[#allocation0]]
  $region26: #{fwd.1} parent=0
    _
  %s7 = ssub.s32 1, %s5
  %s8 = scalar_select 0, %s7, %s5
  // Predicated region
  $region2: #{fwd.1} parent=0 // pred_check
    _
  $region3: #{fwd.1} parent=0 // pred_check_branch
    %10 = sbr.rel (0) target = $region5
  $region4: #{fwd.1} parent=0 // pred_region
    _
  $region5: #{fwd.1} parent=0 // pred_fallthru
    _
  // Predicated region
  $region6: #{fwd.1} parent=0 // pred_check
    _
  $region7: #{fwd.1} parent=0 // pred_check_branch
    %12 = sbr.rel (0) target = $region9
  $region8: #{fwd.1} parent=0 // pred_region
    _
  $region9: #{fwd.1} parent=0 // pred_fallthru
    _
  %v13 = vld [vmem:[%s0] sm:$0xff]
  %v14 = vld [vmem:[%s0 + $0x8] sm:$0xff]
  %v15 = vld [vmem:[%s0 + $0x10] sm:$0xff]
  %v16 = vld [vmem:[%s0 + $0x18] sm:$0xff]
  %v17 = vld [vmem:[%s0 + $0x20] sm:$0xff]
  %v18 = vld [vmem:[%s0 + $0x28] sm:$0xff]
  %v19 = vld [vmem:[%s0 + $0x30] sm:$0xff]
  %v20 = vld [vmem:[%s0 + $0x38] sm:$0xff]
  %v21 = vld [vmem:[%s0 + $0x40] sm:$0xff]
  %v22 = vld [vmem:[%s0 + $0x48] sm:$0xff]
  %v23 = vld [vmem:[%s0 + $0x50] sm:$0xff]
  %v24 = vld [vmem:[%s0 + $0x58] sm:$0xff]
  %v25 = vld [vmem:[%s0 + $0x60] sm:$0xff]
  %v26 = vld [vmem:[%s0 + $0x68] sm:$0xff]
  %v27 = vld [vmem:[%s0 + $0x70] sm:$0xff]
  %v28 = vld [vmem:[%s0 + $0x78] sm:$0xff]
  %v29 = vld [vmem:[%s0 + $0x80] sm:$0xff]
  %v30 = vld [vmem:[%s0 + $0x88] sm:$0xff]
  %v31 = vld [vmem:[%s0 + $0x90] sm:$0xff]
  %v32 = vld [vmem:[%s0 + $0x98] sm:$0xff]
  %v33 = vld [vmem:[%s0 + $0xa0] sm:$0xff]
  %v34 = vld [vmem:[%s0 + $0xa8] sm:$0xff]
  %v35 = vld [vmem:[%s0 + $0xb0] sm:$0xff]
  %v36 = vld [vmem:[%s0 + $0xb8] sm:$0xff]
  %v37 = vld [vmem:[%s0 + $0xc0] sm:$0xff]
  %v38 = vld [vmem:[%s0 + $0xc8] sm:$0xff]
  %v39 = vld [vmem:[%s0 + $0xd0] sm:$0xff]
  %v40 = vld [vmem:[%s0 + $0xd8] sm:$0xff]
  %v41 = vld [vmem:[%s0 + $0xe0] sm:$0xff]
  %v42 = vld [vmem:[%s0 + $0xe8] sm:$0xff]
  %v43 = vld [vmem:[%s0 + $0xf0] sm:$0xff]
  %v44 = vld [vmem:[%s0 + $0xf8] sm:$0xff]
  %v45 = vld [vmem:[%s1] sm:$0xf]
  %v46 = vld [vmem:[%s1 + $0x8] sm:$0x1]
  %v47 = vlaneseq
  %v48 = vshrl.u32 %v47, 7
  %v49 = vsub.s32 0, %v48
  %v50 = vrot.slane %v46, %v49
  %vm51 = vcmask 31744
  %v53 = vsel %vm51, %v13, 0
  %v56 = vsel %vm51, %v14, 0
  %v59 = vsel %vm51, %v15, 0
  %v62 = vsel %vm51, %v16, 0
  %v65 = vsel %vm51, %v17, 0
  %v68 = vsel %vm51, %v18, 0
  %v71 = vsel %vm51, %v19, 0
  %v74 = vsel %vm51, %v20, 0
  %v77 = vsel %vm51, %v21, 0
  %v80 = vsel %vm51, %v22, 0
  %v83 = vsel %vm51, %v23, 0
  %v86 = vsel %vm51, %v24, 0
  %v89 = vsel %vm51, %v25, 0
  %v92 = vsel %vm51, %v26, 0
  %v95 = vsel %vm51, %v27, 0
  %v98 = vsel %vm51, %v28, 0
  %v101 = vsel %vm51, %v29, 0
  %v104 = vsel %vm51, %v30, 0
  %v107 = vsel %vm51, %v31, 0
  %v110 = vsel %vm51, %v32, 0
  %v113 = vsel %vm51, %v33, 0
  %v116 = vsel %vm51, %v34, 0
  %v119 = vsel %vm51, %v35, 0
  %v122 = vsel %vm51, %v36, 0
  %v125 = vsel %vm51, %v37, 0
  %v128 = vsel %vm51, %v38, 0
  %v131 = vsel %vm51, %v39, 0
  %v134 = vsel %vm51, %v40, 0
  %v137 = vsel %vm51, %v41, 0
  %v140 = vsel %vm51, %v42, 0
  %v143 = vsel %vm51, %v43, 0
  %v146 = vsel %vm51, %v44, 0
  %vm148 = vcmask 1043456
  %v150 = vsel %vm148, %v45, 0
  %152 = vmatprep.subr.mxu0 0.0
  %153 = vmatpush1.msra.mxu0 %v150
  %154 = vmatprep.subr.mxu0 0.0
  %155 = vmatpush1.msra.mxu0 0.0
  %156 = vmatprep.subr.mxu0 0.0
  %157 = vmatpush1.msra.mxu0 0.0
  %158 = vmatprep.subr.mxu0 0.0
  %159 = vmatpush1.msra.mxu0 0.0
  %160 = vmatprep.subr.mxu0 0.0
  %161 = vmatpush1.msra.mxu0 0.0
  %162 = vmatprep.subr.mxu0 0.0
  %163 = vmatpush1.msra.mxu0 0.0
  %164 = vmatprep.subr.mxu0 0.0
  %165 = vmatpush1.msra.mxu0 0.0
  %166 = vmatprep.subr.mxu0 0.0
  %167 = vmatpush1.msra.mxu0 0.0
  %168 = vmatprep.subr.mxu0 0.0
  %169 = vmatpush1.msra.mxu0 0.0
  %170 = vmatprep.subr.mxu0 0.0
  %171 = vmatpush1.msra.mxu0 0.0
  %172 = vmatprep.subr.mxu0 0.0
  %173 = vmatpush1.msra.mxu0 0.0
  %174 = vmatprep.subr.mxu0 0.0
  %175 = vmatpush1.msra.mxu0 0.0
  %176 = vmatprep.subr.mxu0 0.0
  %177 = vmatpush1.msra.mxu0 0.0
  %178 = vmatprep.subr.mxu0 0.0
  %179 = vmatpush1.msra.mxu0 0.0
  %180 = vmatprep.subr.mxu0 0.0
  %181 = vmatpush1.msra.mxu0 0.0
  %182 = vmatprep.subr.mxu0 0.0
  %183 = vmatpush1.msra.mxu0 0.0
  %184 = vmatprep.subr.mxu0 0.0
  %185 = vmatpush1.msra.mxu0 0.0
  %186 = vmatprep.subr.mxu0 0.0
  %187 = vmatpush1.msra.mxu0 0.0
  %188 = vmatprep.subr.mxu0 0.0
  %189 = vmatpush1.msra.mxu0 0.0
  %190 = vmatprep.subr.mxu0 0.0
  %191 = vmatpush1.msra.mxu0 0.0
  %192 = vmatprep.subr.mxu0 0.0
  %193 = vmatpush1.msra.mxu0 0.0
  %194 = vmatprep.subr.mxu0 0.0
  %195 = vmatpush1.msra.mxu0 0.0
  %196 = vmatprep.subr.mxu0 0.0
  %197 = vmatpush1.msra.mxu0 0.0
  %198 = vmatprep.subr.mxu0 0.0
  %199 = vmatpush1.msra.mxu0 0.0
  %200 = vmatprep.subr.mxu0 0.0
  %201 = vmatpush1.msra.mxu0 0.0
  %202 = vmatprep.subr.mxu0 0.0
  %203 = vmatpush1.msra.mxu0 0.0
  %204 = vmatprep.subr.mxu0 0.0
  %205 = vmatpush1.msra.mxu0 0.0
  %206 = vmatprep.subr.mxu0 0.0
  %207 = vmatpush1.msra.mxu0 0.0
  %208 = vmatprep.subr.mxu0 0.0
  %209 = vmatpush1.msra.mxu0 0.0
  %210 = vmatprep.subr.mxu0 0.0
  %211 = vmatpush1.msra.mxu0 0.0
  %212 = vmatprep.subr.mxu0 0.0
  %213 = vmatpush1.msra.mxu0 0.0
  %214 = vmatprep.subr.mxu0 0.0
  %215 = vmatpush1.msra.mxu0 0.0
  %216 = vmatprep.mubr.f32.mxu0 0.0
  %217 = vmatmul.mubr.f32.gmra.mrb[0].mxu0 %v53
  %v218 = vpop.f32.mrb[0].mxu0
  %v219 = vadd.f32 %v50, %v218
  %v220 = vpop.f32.mrb[0].mxu0
  %221 = vmatprep.mubr.f32.mxu0 0.0
  %222 = vmatmul.mubr.f32.gmra.mrb[0].mxu0 %v56
  %v223 = vpop.f32.mrb[0].mxu0
  %v224 = vadd.f32 %v50, %v223
  %v225 = vpop.f32.mrb[0].mxu0
  %226 = vmatprep.mubr.f32.mxu0 0.0
  %227 = vmatmul.mubr.f32.gmra.mrb[0].mxu0 %v59
  %v228 = vpop.f32.mrb[0].mxu0
  %v229 = vadd.f32 %v50, %v228
  %v230 = vpop.f32.mrb[0].mxu0
  %231 = vmatprep.mubr.f32.mxu0 0.0
  %232 = vmatmul.mubr.f32.gmra.mrb[0].mxu0 %v62
  %v233 = vpop.f32.mrb[0].mxu0
  %v234 = vadd.f32 %v50, %v233
  %v235 = vpop.f32.mrb[0].mxu0
  %236 = vmatprep.mubr.f32.mxu0 0.0
  %237 = vmatmul.mubr.f32.gmra.mrb[0].mxu0 %v65
  %v238 = vpop.f32.mrb[0].mxu0
  %v239 = vadd.f32 %v50, %v238
  %v240 = vpop.f32.mrb[0].mxu0
  %241 = vmatprep.mubr.f32.mxu0 0.0
  %242 = vmatmul.mubr.f32.gmra.mrb[0].mxu0 %v68
  %v243 = vpop.f32.mrb[0].mxu0
  %v244 = vadd.f32 %v50, %v243
  %v245 = vpop.f32.mrb[0].mxu0
  %246 = vmatprep.mubr.f32.mxu0 0.0
  %247 = vmatmul.mubr.f32.gmra.mrb[0].mxu0 %v71
  %v248 = vpop.f32.mrb[0].mxu0
  %v249 = vadd.f32 %v50, %v248
  %v250 = vpop.f32.mrb[0].mxu0
  %251 = vmatprep.mubr.f32.mxu0 0.0
  %252 = vmatmul.mubr.f32.gmra.mrb[0].mxu0 %v74
  %v253 = vpop.f32.mrb[0].mxu0
  %v254 = vadd.f32 %v50, %v253
  %v255 = vpop.f32.mrb[0].mxu0
  %256 = vmatprep.mubr.f32.mxu0 0.0
  %257 = vmatmul.mubr.f32.gmra.mrb[0].mxu0 %v77
  %v258 = vpop.f32.mrb[0].mxu0
  %v259 = vadd.f32 %v50, %v258
  %v260 = vpop.f32.mrb[0].mxu0
  %261 = vmatprep.mubr.f32.mxu0 0.0
  %262 = vmatmul.mubr.f32.gmra.mrb[0].mxu0 %v80
  %v263 = vpop.f32.mrb[0].mxu0
  %v264 = vadd.f32 %v50, %v263
  %v265 = vpop.f32.mrb[0].mxu0
  %266 = vmatprep.mubr.f32.mxu0 0.0
  %267 = vmatmul.mubr.f32.gmra.mrb[0].mxu0 %v83
  %v268 = vpop.f32.mrb[0].mxu0
  %v269 = vadd.f32 %v50, %v268
  %v270 = vpop.f32.mrb[0].mxu0
  %271 = vmatprep.mubr.f32.mxu0 0.0
  %272 = vmatmul.mubr.f32.gmra.mrb[0].mxu0 %v86
  %v273 = vpop.f32.mrb[0].mxu0
  %v274 = vadd.f32 %v50, %v273
  %v275 = vpop.f32.mrb[0].mxu0
  %276 = vmatprep.mubr.f32.mxu0 0.0
  %277 = vmatmul.mubr.f32.gmra.mrb[0].mxu0 %v89
  %v278 = vpop.f32.mrb[0].mxu0
  %v279 = vadd.f32 %v50, %v278
  %v280 = vpop.f32.mrb[0].mxu0
  %281 = vmatprep.mubr.f32.mxu0 0.0
  %282 = vmatmul.mubr.f32.gmra.mrb[0].mxu0 %v92
  %v283 = vpop.f32.mrb[0].mxu0
  %v284 = vadd.f32 %v50, %v283
  %v285 = vpop.f32.mrb[0].mxu0
  %286 = vmatprep.mubr.f32.mxu0 0.0
  %287 = vmatmul.mubr.f32.gmra.mrb[0].mxu0 %v95
  %v288 = vpop.f32.mrb[0].mxu0
  %v289 = vadd.f32 %v50, %v288
  %v290 = vpop.f32.mrb[0].mxu0
  %291 = vmatprep.mubr.f32.mxu0 0.0
  %292 = vmatmul.mubr.f32.gmra.mrb[0].mxu0 %v98
  %v293 = vpop.f32.mrb[0].mxu0
  %v294 = vadd.f32 %v50, %v293
  %v295 = vpop.f32.mrb[0].mxu0
  %296 = vmatprep.mubr.f32.mxu0 0.0
  %297 = vmatmul.mubr.f32.gmra.mrb[0].mxu0 %v101
  %v298 = vpop.f32.mrb[0].mxu0
  %v299 = vadd.f32 %v50, %v298
  %v300 = vpop.f32.mrb[0].mxu0
  %301 = vmatprep.mubr.f32.mxu0 0.0
  %302 = vmatmul.mubr.f32.gmra.mrb[0].mxu0 %v104
  %v303 = vpop.f32.mrb[0].mxu0
  %v304 = vadd.f32 %v50, %v303
  %v305 = vpop.f32.mrb[0].mxu0
  %306 = vmatprep.mubr.f32.mxu0 0.0
  %307 = vmatmul.mubr.f32.gmra.mrb[0].mxu0 %v107
  %v308 = vpop.f32.mrb[0].mxu0
  %v309 = vadd.f32 %v50, %v308
  %v310 = vpop.f32.mrb[0].mxu0
  %311 = vmatprep.mubr.f32.mxu0 0.0
  %312 = vmatmul.mubr.f32.gmra.mrb[0].mxu0 %v110
  %v313 = vpop.f32.mrb[0].mxu0
  %v314 = vadd.f32 %v50, %v313
  %v315 = vpop.f32.mrb[0].mxu0
  %316 = vmatprep.mubr.f32.mxu0 0.0
  %317 = vmatmul.mubr.f32.gmra.mrb[0].mxu0 %v113
  %v318 = vpop.f32.mrb[0].mxu0
  %v319 = vadd.f32 %v50, %v318
  %v320 = vpop.f32.mrb[0].mxu0
  %321 = vmatprep.mubr.f32.mxu0 0.0
  %322 = vmatmul.mubr.f32.gmra.mrb[0].mxu0 %v116
  %v323 = vpop.f32.mrb[0].mxu0
  %v324 = vadd.f32 %v50, %v323
  %v325 = vpop.f32.mrb[0].mxu0
  %326 = vmatprep.mubr.f32.mxu0 0.0
  %327 = vmatmul.mubr.f32.gmra.mrb[0].mxu0 %v119
  %v328 = vpop.f32.mrb[0].mxu0
  %v329 = vadd.f32 %v50, %v328
  %v330 = vpop.f32.mrb[0].mxu0
  %331 = vmatprep.mubr.f32.mxu0 0.0
  %332 = vmatmul.mubr.f32.gmra.mrb[0].mxu0 %v122
  %v333 = vpop.f32.mrb[0].mxu0
  %v334 = vadd.f32 %v50, %v333
  %v335 = vpop.f32.mrb[0].mxu0
  %336 = vmatprep.mubr.f32.mxu0 0.0
  %337 = vmatmul.mubr.f32.gmra.mrb[0].mxu0 %v125
  %v338 = vpop.f32.mrb[0].mxu0
  %v339 = vadd.f32 %v50, %v338
  %v340 = vpop.f32.mrb[0].mxu0
  %341 = vmatprep.mubr.f32.mxu0 0.0
  %342 = vmatmul.mubr.f32.gmra.mrb[0].mxu0 %v128
  %v343 = vpop.f32.mrb[0].mxu0
  %v344 = vadd.f32 %v50, %v343
  %v345 = vpop.f32.mrb[0].mxu0
  %346 = vmatprep.mubr.f32.mxu0 0.0
  %347 = vmatmul.mubr.f32.gmra.mrb[0].mxu0 %v131
  %v348 = vpop.f32.mrb[0].mxu0
  %v349 = vadd.f32 %v50, %v348
  %v350 = vpop.f32.mrb[0].mxu0
  %351 = vmatprep.mubr.f32.mxu0 0.0
  %352 = vmatmul.mubr.f32.gmra.mrb[0].mxu0 %v134
  %v353 = vpop.f32.mrb[0].mxu0
  %v354 = vadd.f32 %v50, %v353
  %v355 = vpop.f32.mrb[0].mxu0
  %356 = vmatprep.mubr.f32.mxu0 0.0
  %357 = vmatmul.mubr.f32.gmra.mrb[0].mxu0 %v137
  %v358 = vpop.f32.mrb[0].mxu0
  %v359 = vadd.f32 %v50, %v358
  %v360 = vpop.f32.mrb[0].mxu0
  %361 = vmatprep.mubr.f32.mxu0 0.0
  %362 = vmatmul.mubr.f32.gmra.mrb[0].mxu0 %v140
  %v363 = vpop.f32.mrb[0].mxu0
  %v364 = vadd.f32 %v50, %v363
  %v365 = vpop.f32.mrb[0].mxu0
  %366 = vmatprep.mubr.f32.mxu0 0.0
  %367 = vmatmul.mubr.f32.gmra.mrb[0].mxu0 %v143
  %v368 = vpop.f32.mrb[0].mxu0
  %v369 = vadd.f32 %v50, %v368
  %v370 = vpop.f32.mrb[0].mxu0
  %371 = vmatprep.mubr.f32.mxu0 0.0
  %372 = vmatmul.mubr.f32.gmra.mrb[0].mxu0 %v146
  %v373 = vpop.f32.mrb[0].mxu0
  %v374 = vadd.f32 %v50, %v373
  %v375 = vpop.f32.mrb[0].mxu0
  %376 = vdwg.mxu0
  %v377 = vmax.f32 %v219, 0.0
  %v378 = vmax.f32 %v224, 0.0
  %v379 = vmax.f32 %v229, 0.0
  %v380 = vmax.f32 %v234, 0.0
  %v381 = vmax.f32 %v239, 0.0
  %v382 = vmax.f32 %v244, 0.0
  %v383 = vmax.f32 %v249, 0.0
  %v384 = vmax.f32 %v254, 0.0
  %v385 = vmax.f32 %v259, 0.0
  %v386 = vmax.f32 %v264, 0.0
  %v387 = vmax.f32 %v269, 0.0
  %v388 = vmax.f32 %v274, 0.0
  %v389 = vmax.f32 %v279, 0.0
  %v390 = vmax.f32 %v284, 0.0
  %v391 = vmax.f32 %v289, 0.0
  %v392 = vmax.f32 %v294, 0.0
  %v393 = vmax.f32 %v299, 0.0
  %v394 = vmax.f32 %v304, 0.0
  %v395 = vmax.f32 %v309, 0.0
  %v396 = vmax.f32 %v314, 0.0
  %v397 = vmax.f32 %v319, 0.0
  %v398 = vmax.f32 %v324, 0.0
  %v399 = vmax.f32 %v329, 0.0
  %v400 = vmax.f32 %v334, 0.0
  %v401 = vmax.f32 %v339, 0.0
  %v402 = vmax.f32 %v344, 0.0
  %v403 = vmax.f32 %v349, 0.0
  %v404 = vmax.f32 %v354, 0.0
  %v405 = vmax.f32 %v359, 0.0
  %v406 = vmax.f32 %v364, 0.0
  %v407 = vmax.f32 %v369, 0.0
  %v408 = vmax.f32 %v374, 0.0
  %v409 = vld [vmem:[%s1 + $0x10] sm:$0xff]
  %v410 = vld [vmem:[%s1 + $0x18] sm:$0xff]
  %v411 = vld [vmem:[%s1 + $0x20] sm:$0xff]
  %v412 = vld [vmem:[%s1 + $0x28] sm:$0xff]
  %v413 = vld [vmem:[%s1 + $0x30] sm:$0x1]
  %v414 = vlaneseq
  %v415 = vshrl.u32 %v414, 7
  %v416 = vsub.s32 0, %v415
  %v417 = vrot.slane %v413, %v416
  %vm418 = vcmask 261120
  %v420 = vsel %vm418, %v377, 0
  %v423 = vsel %vm418, %v378, 0
  %v426 = vsel %vm418, %v379, 0
  %v429 = vsel %vm418, %v380, 0
  %v432 = vsel %vm418, %v381, 0
  %v435 = vsel %vm418, %v382, 0
  %v438 = vsel %vm418, %v383, 0
  %v441 = vsel %vm418, %v384, 0
  %v444 = vsel %vm418, %v385, 0
  %v447 = vsel %vm418, %v386, 0
  %v450 = vsel %vm418, %v387, 0
  %v453 = vsel %vm418, %v388, 0
  %v456 = vsel %vm418, %v389, 0
  %v459 = vsel %vm418, %v390, 0
  %v462 = vsel %vm418, %v391, 0
  %v465 = vsel %vm418, %v392, 0
  %v468 = vsel %vm418, %v393, 0
  %v471 = vsel %vm418, %v394, 0
  %v474 = vsel %vm418, %v395, 0
  %v477 = vsel %vm418, %v396, 0
  %v480 = vsel %vm418, %v397, 0
  %v483 = vsel %vm418, %v398, 0
  %v486 = vsel %vm418, %v399, 0
  %v489 = vsel %vm418, %v400, 0
  %v492 = vsel %vm418, %v401, 0
  %v495 = vsel %vm418, %v402, 0
  %v498 = vsel %vm418, %v403, 0
  %v501 = vsel %vm418, %v404, 0
  %v504 = vsel %vm418, %v405, 0
  %v507 = vsel %vm418, %v406, 0
  %v510 = vsel %vm418, %v407, 0
  %v513 = vsel %vm418, %v408, 0
  %515 = vmatprep.subr.mxu0 0.0
  %516 = vmatpush1.msra.mxu0 %v409
  %517 = vmatprep.subr.mxu0 0.0
  %518 = vmatpush1.msra.mxu0 %v410
  %519 = vmatprep.subr.mxu0 0.0
  %520 = vmatpush1.msra.mxu0 %v411
  %521 = vmatprep.subr.mxu0 0.0
  %522 = vmatpush1.msra.mxu0 %v412
  %523 = vmatprep.subr.mxu0 0.0
  %524 = vmatpush1.msra.mxu0 0.0
  %525 = vmatprep.subr.mxu0 0.0
  %526 = vmatpush1.msra.mxu0 0.0
  %527 = vmatprep.subr.mxu0 0.0
  %528 = vmatpush1.msra.mxu0 0.0
  %529 = vmatprep.subr.mxu0 0.0
  %530 = vmatpush1.msra.mxu0 0.0
  %531 = vmatprep.subr.mxu0 0.0
  %532 = vmatpush1.msra.mxu0 0.0
  %533 = vmatprep.subr.mxu0 0.0
  %534 = vmatpush1.msra.mxu0 0.0
  %535 = vmatprep.subr.mxu0 0.0
  %536 = vmatpush1.msra.mxu0 0.0
  %537 = vmatprep.subr.mxu0 0.0
  %538 = vmatpush1.msra.mxu0 0.0
  %539 = vmatprep.subr.mxu0 0.0
  %540 = vmatpush1.msra.mxu0 0.0
  %541 = vmatprep.subr.mxu0 0.0
  %542 = vmatpush1.msra.mxu0 0.0
  %543 = vmatprep.subr.mxu0 0.0
  %544 = vmatpush1.msra.mxu0 0.0
  %545 = vmatprep.subr.mxu0 0.0
  %546 = vmatpush1.msra.mxu0 0.0
  %547 = vmatprep.subr.mxu0 0.0
  %548 = vmatpush1.msra.mxu0 0.0
  %549 = vmatprep.subr.mxu0 0.0
  %550 = vmatpush1.msra.mxu0 0.0
  %551 = vmatprep.subr.mxu0 0.0
  %552 = vmatpush1.msra.mxu0 0.0
  %553 = vmatprep.subr.mxu0 0.0
  %554 = vmatpush1.msra.mxu0 0.0
  %555 = vmatprep.subr.mxu0 0.0
  %556 = vmatpush1.msra.mxu0 0.0
  %557 = vmatprep.subr.mxu0 0.0
  %558 = vmatpush1.msra.mxu0 0.0
  %559 = vmatprep.subr.mxu0 0.0
  %560 = vmatpush1.msra.mxu0 0.0
  %561 = vmatprep.subr.mxu0 0.0
  %562 = vmatpush1.msra.mxu0 0.0
  %563 = vmatprep.subr.mxu0 0.0
  %564 = vmatpush1.msra.mxu0 0.0
  %565 = vmatprep.subr.mxu0 0.0
  %566 = vmatpush1.msra.mxu0 0.0
  %567 = vmatprep.subr.mxu0 0.0
  %568 = vmatpush1.msra.mxu0 0.0
  %569 = vmatprep.subr.mxu0 0.0
  %570 = vmatpush1.msra.mxu0 0.0
  %571 = vmatprep.subr.mxu0 0.0
  %572 = vmatpush1.msra.mxu0 0.0
  %573 = vmatprep.subr.mxu0 0.0
  %574 = vmatpush1.msra.mxu0 0.0
  %575 = vmatprep.subr.mxu0 0.0
  %576 = vmatpush1.msra.mxu0 0.0
  %577 = vmatprep.subr.mxu0 0.0
  %578 = vmatpush1.msra.mxu0 0.0
  %579 = vmatprep.mubr.f32.mxu0 0.0
  %580 = vmatmul.mubr.f32.gmra.mrb[0].mxu0 %v420
  %v581 = vpop.f32.mrb[0].mxu0
  %v582 = vadd.f32 %v417, %v581
  %v583 = vpop.f32.mrb[0].mxu0
  %584 = vmatprep.mubr.f32.mxu0 0.0
  %585 = vmatmul.mubr.f32.gmra.mrb[0].mxu0 %v423
  %v586 = vpop.f32.mrb[0].mxu0
  %v587 = vadd.f32 %v417, %v586
  %v588 = vpop.f32.mrb[0].mxu0
  %589 = vmatprep.mubr.f32.mxu0 0.0
  %590 = vmatmul.mubr.f32.gmra.mrb[0].mxu0 %v426
  %v591 = vpop.f32.mrb[0].mxu0
  %v592 = vadd.f32 %v417, %v591
  %v593 = vpop.f32.mrb[0].mxu0
  %594 = vmatprep.mubr.f32.mxu0 0.0
  %595 = vmatmul.mubr.f32.gmra.mrb[0].mxu0 %v429
  %v596 = vpop.f32.mrb[0].mxu0
  %v597 = vadd.f32 %v417, %v596
  %v598 = vpop.f32.mrb[0].mxu0
  %599 = vmatprep.mubr.f32.mxu0 0.0
  %600 = vmatmul.mubr.f32.gmra.mrb[0].mxu0 %v432
  %v601 = vpop.f32.mrb[0].mxu0
  %v602 = vadd.f32 %v417, %v601
  %v603 = vpop.f32.mrb[0].mxu0
  %604 = vmatprep.mubr.f32.mxu0 0.0
  %605 = vmatmul.mubr.f32.gmra.mrb[0].mxu0 %v435
  %v606 = vpop.f32.mrb[0].mxu0
  %v607 = vadd.f32 %v417, %v606
  %v608 = vpop.f32.mrb[0].mxu0
  %609 = vmatprep.mubr.f32.mxu0 0.0
  %610 = vmatmul.mubr.f32.gmra.mrb[0].mxu0 %v438
  %v611 = vpop.f32.mrb[0].mxu0
  %v612 = vadd.f32 %v417, %v611
  %v613 = vpop.f32.mrb[0].mxu0
  %614 = vmatprep.mubr.f32.mxu0 0.0
  %615 = vmatmul.mubr.f32.gmra.mrb[0].mxu0 %v441
  %v616 = vpop.f32.mrb[0].mxu0
  %v617 = vadd.f32 %v417, %v616
  %v618 = vpop.f32.mrb[0].mxu0
  %619 = vmatprep.mubr.f32.mxu0 0.0
  %620 = vmatmul.mubr.f32.gmra.mrb[0].mxu0 %v444
  %v621 = vpop.f32.mrb[0].mxu0
  %v622 = vadd.f32 %v417, %v621
  %v623 = vpop.f32.mrb[0].mxu0
  %624 = vmatprep.mubr.f32.mxu0 0.0
  %625 = vmatmul.mubr.f32.gmra.mrb[0].mxu0 %v447
  %v626 = vpop.f32.mrb[0].mxu0
  %v627 = vadd.f32 %v417, %v626
  %v628 = vpop.f32.mrb[0].mxu0
  %629 = vmatprep.mubr.f32.mxu0 0.0
  %630 = vmatmul.mubr.f32.gmra.mrb[0].mxu0 %v450
  %v631 = vpop.f32.mrb[0].mxu0
  %v632 = vadd.f32 %v417, %v631
  %v633 = vpop.f32.mrb[0].mxu0
  %634 = vmatprep.mubr.f32.mxu0 0.0
  %635 = vmatmul.mubr.f32.gmra.mrb[0].mxu0 %v453
  %v636 = vpop.f32.mrb[0].mxu0
  %v637 = vadd.f32 %v417, %v636
  %v638 = vpop.f32.mrb[0].mxu0
  %639 = vmatprep.mubr.f32.mxu0 0.0
  %640 = vmatmul.mubr.f32.gmra.mrb[0].mxu0 %v456
  %v641 = vpop.f32.mrb[0].mxu0
  %v642 = vadd.f32 %v417, %v641
  %v643 = vpop.f32.mrb[0].mxu0
  %644 = vmatprep.mubr.f32.mxu0 0.0
  %645 = vmatmul.mubr.f32.gmra.mrb[0].mxu0 %v459
  %v646 = vpop.f32.mrb[0].mxu0
  %v647 = vadd.f32 %v417, %v646
  %v648 = vpop.f32.mrb[0].mxu0
  %649 = vmatprep.mubr.f32.mxu0 0.0
  %650 = vmatmul.mubr.f32.gmra.mrb[0].mxu0 %v462
  %v651 = vpop.f32.mrb[0].mxu0
  %v652 = vadd.f32 %v417, %v651
  %v653 = vpop.f32.mrb[0].mxu0
  %654 = vmatprep.mubr.f32.mxu0 0.0
  %655 = vmatmul.mubr.f32.gmra.mrb[0].mxu0 %v465
  %v656 = vpop.f32.mrb[0].mxu0
  %v657 = vadd.f32 %v417, %v656
  %v658 = vpop.f32.mrb[0].mxu0
  %659 = vmatprep.mubr.f32.mxu0 0.0
  %660 = vmatmul.mubr.f32.gmra.mrb[0].mxu0 %v468
  %v661 = vpop.f32.mrb[0].mxu0
  %v662 = vadd.f32 %v417, %v661
  %v663 = vpop.f32.mrb[0].mxu0
  %664 = vmatprep.mubr.f32.mxu0 0.0
  %665 = vmatmul.mubr.f32.gmra.mrb[0].mxu0 %v471
  %v666 = vpop.f32.mrb[0].mxu0
  %v667 = vadd.f32 %v417, %v666
  %v668 = vpop.f32.mrb[0].mxu0
  %669 = vmatprep.mubr.f32.mxu0 0.0
  %670 = vmatmul.mubr.f32.gmra.mrb[0].mxu0 %v474
  %v671 = vpop.f32.mrb[0].mxu0
  %v672 = vadd.f32 %v417, %v671
  %v673 = vpop.f32.mrb[0].mxu0
  %674 = vmatprep.mubr.f32.mxu0 0.0
  %675 = vmatmul.mubr.f32.gmra.mrb[0].mxu0 %v477
  %v676 = vpop.f32.mrb[0].mxu0
  %v677 = vadd.f32 %v417, %v676
  %v678 = vpop.f32.mrb[0].mxu0
  %679 = vmatprep.mubr.f32.mxu0 0.0
  %680 = vmatmul.mubr.f32.gmra.mrb[0].mxu0 %v480
  %v681 = vpop.f32.mrb[0].mxu0
  %v682 = vadd.f32 %v417, %v681
  %v683 = vpop.f32.mrb[0].mxu0
  %684 = vmatprep.mubr.f32.mxu0 0.0
  %685 = vmatmul.mubr.f32.gmra.mrb[0].mxu0 %v483
  %v686 = vpop.f32.mrb[0].mxu0
  %v687 = vadd.f32 %v417, %v686
  %v688 = vpop.f32.mrb[0].mxu0
  %689 = vmatprep.mubr.f32.mxu0 0.0
  %690 = vmatmul.mubr.f32.gmra.mrb[0].mxu0 %v486
  %v691 = vpop.f32.mrb[0].mxu0
  %v692 = vadd.f32 %v417, %v691
  %v693 = vpop.f32.mrb[0].mxu0
  %694 = vmatprep.mubr.f32.mxu0 0.0
  %695 = vmatmul.mubr.f32.gmra.mrb[0].mxu0 %v489
  %v696 = vpop.f32.mrb[0].mxu0
  %v697 = vadd.f32 %v417, %v696
  %v698 = vpop.f32.mrb[0].mxu0
  %699 = vmatprep.mubr.f32.mxu0 0.0
  %700 = vmatmul.mubr.f32.gmra.mrb[0].mxu0 %v492
  %v701 = vpop.f32.mrb[0].mxu0
  %v702 = vadd.f32 %v417, %v701
  %v703 = vpop.f32.mrb[0].mxu0
  %704 = vmatprep.mubr.f32.mxu0 0.0
  %705 = vmatmul.mubr.f32.gmra.mrb[0].mxu0 %v495
  %v706 = vpop.f32.mrb[0].mxu0
  %v707 = vadd.f32 %v417, %v706
  %v708 = vpop.f32.mrb[0].mxu0
  %709 = vmatprep.mubr.f32.mxu0 0.0
  %710 = vmatmul.mubr.f32.gmra.mrb[0].mxu0 %v498
  %v711 = vpop.f32.mrb[0].mxu0
  %v712 = vadd.f32 %v417, %v711
  %v713 = vpop.f32.mrb[0].mxu0
  %714 = vmatprep.mubr.f32.mxu0 0.0
  %715 = vmatmul.mubr.f32.gmra.mrb[0].mxu0 %v501
  %v716 = vpop.f32.mrb[0].mxu0
  %v717 = vadd.f32 %v417, %v716
  %v718 = vpop.f32.mrb[0].mxu0
  %719 = vmatprep.mubr.f32.mxu0 0.0
  %720 = vmatmul.mubr.f32.gmra.mrb[0].mxu0 %v504
  %v721 = vpop.f32.mrb[0].mxu0
  %v722 = vadd.f32 %v417, %v721
  %v723 = vpop.f32.mrb[0].mxu0
  %724 = vmatprep.mubr.f32.mxu0 0.0
  %725 = vmatmul.mubr.f32.gmra.mrb[0].mxu0 %v507
  %v726 = vpop.f32.mrb[0].mxu0
  %v727 = vadd.f32 %v417, %v726
  %v728 = vpop.f32.mrb[0].mxu0
  %729 = vmatprep.mubr.f32.mxu0 0.0
  %730 = vmatmul.mubr.f32.gmra.mrb[0].mxu0 %v510
  %v731 = vpop.f32.mrb[0].mxu0
  %v732 = vadd.f32 %v417, %v731
  %v733 = vpop.f32.mrb[0].mxu0
  %734 = vmatprep.mubr.f32.mxu0 0.0
  %735 = vmatmul.mubr.f32.gmra.mrb[0].mxu0 %v513
  %v736 = vpop.f32.mrb[0].mxu0
  %v737 = vadd.f32 %v417, %v736
  %v738 = vpop.f32.mrb[0].mxu0
  %739 = vdwg.mxu0
  %v740 = vmax.f32 %v582, 0.0
  %v741 = vmax.f32 %v587, 0.0
  %v742 = vmax.f32 %v592, 0.0
  %v743 = vmax.f32 %v597, 0.0
  %v744 = vmax.f32 %v602, 0.0
  %v745 = vmax.f32 %v607, 0.0
  %v746 = vmax.f32 %v612, 0.0
  %v747 = vmax.f32 %v617, 0.0
  %v748 = vmax.f32 %v622, 0.0
  %v749 = vmax.f32 %v627, 0.0
  %v750 = vmax.f32 %v632, 0.0
  %v751 = vmax.f32 %v637, 0.0
  %v752 = vmax.f32 %v642, 0.0
  %v753 = vmax.f32 %v647, 0.0
  %v754 = vmax.f32 %v652, 0.0
  %v755 = vmax.f32 %v657, 0.0
  %v756 = vmax.f32 %v662, 0.0
  %v757 = vmax.f32 %v667, 0.0
  %v758 = vmax.f32 %v672, 0.0
  %v759 = vmax.f32 %v677, 0.0
  %v760 = vmax.f32 %v682, 0.0
  %v761 = vmax.f32 %v687, 0.0
  %v762 = vmax.f32 %v692, 0.0
  %v763 = vmax.f32 %v697, 0.0
  %v764 = vmax.f32 %v702, 0.0
  %v765 = vmax.f32 %v707, 0.0
  %v766 = vmax.f32 %v712, 0.0
  %v767 = vmax.f32 %v717, 0.0
  %v768 = vmax.f32 %v722, 0.0
  %v769 = vmax.f32 %v727, 0.0
  %v770 = vmax.f32 %v732, 0.0
  %v771 = vmax.f32 %v737, 0.0
  %v772 = vld [vmem:[%s1 + $0x38] sm:$0xff]
  %v773 = vld [vmem:[%s1 + $0x40] sm:$0xff]
  %v774 = vld [vmem:[%s1 + $0x48] sm:$0xff]
  %v775 = vld [vmem:[%s1 + $0x50] sm:$0xff]
  %v776 = vld [vmem:[%s1 + $0x58] sm:$0x1]
  %v777 = vlaneseq
  %v778 = vshrl.u32 %v777, 7
  %v779 = vsub.s32 0, %v778
  %v780 = vrot.slane %v776, %v779
  %v782 = vsel %vm418, %v740, 0
  %v785 = vsel %vm418, %v741, 0
  %v788 = vsel %vm418, %v742, 0
  %v791 = vsel %vm418, %v743, 0
  %v794 = vsel %vm418, %v744, 0
  %v797 = vsel %vm418, %v745, 0
  %v800 = vsel %vm418, %v746, 0
  %v803 = vsel %vm418, %v747, 0
  %v806 = vsel %vm418, %v748, 0
  %v809 = vsel %vm418, %v749, 0
  %v812 = vsel %vm418, %v750, 0
  %v815 = vsel %vm418, %v751, 0
  %v818 = vsel %vm418, %v752, 0
  %v821 = vsel %vm418, %v753, 0
  %v824 = vsel %vm418, %v754, 0
  %v827 = vsel %vm418, %v755, 0
  %v830 = vsel %vm418, %v756, 0
  %v833 = vsel %vm418, %v757, 0
  %v836 = vsel %vm418, %v758, 0
  %v839 = vsel %vm418, %v759, 0
  %v842 = vsel %vm418, %v760, 0
  %v845 = vsel %vm418, %v761, 0
  %v848 = vsel %vm418, %v762, 0
  %v851 = vsel %vm418, %v763, 0
  %v854 = vsel %vm418, %v764, 0
  %v857 = vsel %vm418, %v765, 0
  %v860 = vsel %vm418, %v766, 0
  %v863 = vsel %vm418, %v767, 0
  %v866 = vsel %vm418, %v768, 0
  %v869 = vsel %vm418, %v769, 0
  %v872 = vsel %vm418, %v770, 0
  %v875 = vsel %vm418, %v771, 0
  %877 = vmatprep.subr.mxu0 0.0
  %878 = vmatpush1.msra.mxu0 %v772
  %879 = vmatprep.subr.mxu0 0.0
  %880 = vmatpush1.msra.mxu0 %v773
  %881 = vmatprep.subr.mxu0 0.0
  %882 = vmatpush1.msra.mxu0 %v774
  %883 = vmatprep.subr.mxu0 0.0
  %884 = vmatpush1.msra.mxu0 %v775
  %885 = vmatprep.subr.mxu0 0.0
  %886 = vmatpush1.msra.mxu0 0.0
  %887 = vmatprep.subr.mxu0 0.0
  %888 = vmatpush1.msra.mxu0 0.0
  %889 = vmatprep.subr.mxu0 0.0
  %890 = vmatpush1.msra.mxu0 0.0
  %891 = vmatprep.subr.mxu0 0.0
  %892 = vmatpush1.msra.mxu0 0.0
  %893 = vmatprep.subr.mxu0 0.0
  %894 = vmatpush1.msra.mxu0 0.0
  %895 = vmatprep.subr.mxu0 0.0
  %896 = vmatpush1.msra.mxu0 0.0
  %897 = vmatprep.subr.mxu0 0.0
  %898 = vmatpush1.msra.mxu0 0.0
  %899 = vmatprep.subr.mxu0 0.0
  %900 = vmatpush1.msra.mxu0 0.0
  %901 = vmatprep.subr.mxu0 0.0
  %902 = vmatpush1.msra.mxu0 0.0
  %903 = vmatprep.subr.mxu0 0.0
  %904 = vmatpush1.msra.mxu0 0.0
  %905 = vmatprep.subr.mxu0 0.0
  %906 = vmatpush1.msra.mxu0 0.0
  %907 = vmatprep.subr.mxu0 0.0
  %908 = vmatpush1.msra.mxu0 0.0
  %909 = vmatprep.subr.mxu0 0.0
  %910 = vmatpush1.msra.mxu0 0.0
  %911 = vmatprep.subr.mxu0 0.0
  %912 = vmatpush1.msra.mxu0 0.0
  %913 = vmatprep.subr.mxu0 0.0
  %914 = vmatpush1.msra.mxu0 0.0
  %915 = vmatprep.subr.mxu0 0.0
  %916 = vmatpush1.msra.mxu0 0.0
  %917 = vmatprep.subr.mxu0 0.0
  %918 = vmatpush1.msra.mxu0 0.0
  %919 = vmatprep.subr.mxu0 0.0
  %920 = vmatpush1.msra.mxu0 0.0
  %921 = vmatprep.subr.mxu0 0.0
  %922 = vmatpush1.msra.mxu0 0.0
  %923 = vmatprep.subr.mxu0 0.0
  %924 = vmatpush1.msra.mxu0 0.0
  %925 = vmatprep.subr.mxu0 0.0
  %926 = vmatpush1.msra.mxu0 0.0
  %927 = vmatprep.subr.mxu0 0.0
  %928 = vmatpush1.msra.mxu0 0.0
  %929 = vmatprep.subr.mxu0 0.0
  %930 = vmatpush1.msra.mxu0 0.0
  %931 = vmatprep.subr.mxu0 0.0
  %932 = vmatpush1.msra.mxu0 0.0
  %933 = vmatprep.subr.mxu0 0.0
  %934 = vmatpush1.msra.mxu0 0.0
  %935 = vmatprep.subr.mxu0 0.0
  %936 = vmatpush1.msra.mxu0 0.0
  %937 = vmatprep.subr.mxu0 0.0
  %938 = vmatpush1.msra.mxu0 0.0
  %939 = vmatprep.subr.mxu0 0.0
  %940 = vmatpush1.msra.mxu0 0.0
  %941 = vmatprep.mubr.f32.mxu0 0.0
  %942 = vmatmul.mubr.f32.gmra.mrb[0].mxu0 %v782
  %v943 = vpop.f32.mrb[0].mxu0
  %v944 = vadd.f32 %v780, %v943
  %v945 = vpop.f32.mrb[0].mxu0
  %946 = vmatprep.mubr.f32.mxu0 0.0
  %947 = vmatmul.mubr.f32.gmra.mrb[0].mxu0 %v785
  %v948 = vpop.f32.mrb[0].mxu0
  %v949 = vadd.f32 %v780, %v948
  %v950 = vpop.f32.mrb[0].mxu0
  %951 = vmatprep.mubr.f32.mxu0 0.0
  %952 = vmatmul.mubr.f32.gmra.mrb[0].mxu0 %v788
  %v953 = vpop.f32.mrb[0].mxu0
  %v954 = vadd.f32 %v780, %v953
  %v955 = vpop.f32.mrb[0].mxu0
  %956 = vmatprep.mubr.f32.mxu0 0.0
  %957 = vmatmul.mubr.f32.gmra.mrb[0].mxu0 %v791
  %v958 = vpop.f32.mrb[0].mxu0
  %v959 = vadd.f32 %v780, %v958
  %v960 = vpop.f32.mrb[0].mxu0
  %961 = vmatprep.mubr.f32.mxu0 0.0
  %962 = vmatmul.mubr.f32.gmra.mrb[0].mxu0 %v794
  %v963 = vpop.f32.mrb[0].mxu0
  %v964 = vadd.f32 %v780, %v963
  %v965 = vpop.f32.mrb[0].mxu0
  %966 = vmatprep.mubr.f32.mxu0 0.0
  %967 = vmatmul.mubr.f32.gmra.mrb[0].mxu0 %v797
  %v968 = vpop.f32.mrb[0].mxu0
  %v969 = vadd.f32 %v780, %v968
  %v970 = vpop.f32.mrb[0].mxu0
  %971 = vmatprep.mubr.f32.mxu0 0.0
  %972 = vmatmul.mubr.f32.gmra.mrb[0].mxu0 %v800
  %v973 = vpop.f32.mrb[0].mxu0
  %v974 = vadd.f32 %v780, %v973
  %v975 = vpop.f32.mrb[0].mxu0
  %976 = vmatprep.mubr.f32.mxu0 0.0
  %977 = vmatmul.mubr.f32.gmra.mrb[0].mxu0 %v803
  %v978 = vpop.f32.mrb[0].mxu0
  %v979 = vadd.f32 %v780, %v978
  %v980 = vpop.f32.mrb[0].mxu0
  %981 = vmatprep.mubr.f32.mxu0 0.0
  %982 = vmatmul.mubr.f32.gmra.mrb[0].mxu0 %v806
  %v983 = vpop.f32.mrb[0].mxu0
  %v984 = vadd.f32 %v780, %v983
  %v985 = vpop.f32.mrb[0].mxu0
  %986 = vmatprep.mubr.f32.mxu0 0.0
  %987 = vmatmul.mubr.f32.gmra.mrb[0].mxu0 %v809
  %v988 = vpop.f32.mrb[0].mxu0
  %v989 = vadd.f32 %v780, %v988
  %v990 = vpop.f32.mrb[0].mxu0
  %991 = vmatprep.mubr.f32.mxu0 0.0
  %992 = vmatmul.mubr.f32.gmra.mrb[0].mxu0 %v812
  %v993 = vpop.f32.mrb[0].mxu0
  %v994 = vadd.f32 %v780, %v993
  %v995 = vpop.f32.mrb[0].mxu0
  %996 = vmatprep.mubr.f32.mxu0 0.0
  %997 = vmatmul.mubr.f32.gmra.mrb[0].mxu0 %v815
  %v998 = vpop.f32.mrb[0].mxu0
  %v999 = vadd.f32 %v780, %v998
  %v1000 = vpop.f32.mrb[0].mxu0
  %1001 = vmatprep.mubr.f32.mxu0 0.0
  %1002 = vmatmul.mubr.f32.gmra.mrb[0].mxu0 %v818
  %v1003 = vpop.f32.mrb[0].mxu0
  %v1004 = vadd.f32 %v780, %v1003
  %v1005 = vpop.f32.mrb[0].mxu0
  %1006 = vmatprep.mubr.f32.mxu0 0.0
  %1007 = vmatmul.mubr.f32.gmra.mrb[0].mxu0 %v821
  %v1008 = vpop.f32.mrb[0].mxu0
  %v1009 = vadd.f32 %v780, %v1008
  %v1010 = vpop.f32.mrb[0].mxu0
  %1011 = vmatprep.mubr.f32.mxu0 0.0
  %1012 = vmatmul.mubr.f32.gmra.mrb[0].mxu0 %v824
  %v1013 = vpop.f32.mrb[0].mxu0
  %v1014 = vadd.f32 %v780, %v1013
  %v1015 = vpop.f32.mrb[0].mxu0
  %1016 = vmatprep.mubr.f32.mxu0 0.0
  %1017 = vmatmul.mubr.f32.gmra.mrb[0].mxu0 %v827
  %v1018 = vpop.f32.mrb[0].mxu0
  %v1019 = vadd.f32 %v780, %v1018
  %v1020 = vpop.f32.mrb[0].mxu0
  %1021 = vmatprep.mubr.f32.mxu0 0.0
  %1022 = vmatmul.mubr.f32.gmra.mrb[0].mxu0 %v830
  %v1023 = vpop.f32.mrb[0].mxu0
  %v1024 = vadd.f32 %v780, %v1023
  %v1025 = vpop.f32.mrb[0].mxu0
  %1026 = vmatprep.mubr.f32.mxu0 0.0
  %1027 = vmatmul.mubr.f32.gmra.mrb[0].mxu0 %v833
  %v1028 = vpop.f32.mrb[0].mxu0
  %v1029 = vadd.f32 %v780, %v1028
  %v1030 = vpop.f32.mrb[0].mxu0
  %1031 = vmatprep.mubr.f32.mxu0 0.0
  %1032 = vmatmul.mubr.f32.gmra.mrb[0].mxu0 %v836
  %v1033 = vpop.f32.mrb[0].mxu0
  %v1034 = vadd.f32 %v780, %v1033
  %v1035 = vpop.f32.mrb[0].mxu0
  %1036 = vmatprep.mubr.f32.mxu0 0.0
  %1037 = vmatmul.mubr.f32.gmra.mrb[0].mxu0 %v839
  %v1038 = vpop.f32.mrb[0].mxu0
  %v1039 = vadd.f32 %v780, %v1038
  %v1040 = vpop.f32.mrb[0].mxu0
  %1041 = vmatprep.mubr.f32.mxu0 0.0
  %1042 = vmatmul.mubr.f32.gmra.mrb[0].mxu0 %v842
  %v1043 = vpop.f32.mrb[0].mxu0
  %v1044 = vadd.f32 %v780, %v1043
  %v1045 = vpop.f32.mrb[0].mxu0
  %1046 = vmatprep.mubr.f32.mxu0 0.0
  %1047 = vmatmul.mubr.f32.gmra.mrb[0].mxu0 %v845
  %v1048 = vpop.f32.mrb[0].mxu0
  %v1049 = vadd.f32 %v780, %v1048
  %v1050 = vpop.f32.mrb[0].mxu0
  %1051 = vmatprep.mubr.f32.mxu0 0.0
  %1052 = vmatmul.mubr.f32.gmra.mrb[0].mxu0 %v848
  %v1053 = vpop.f32.mrb[0].mxu0
  %v1054 = vadd.f32 %v780, %v1053
  %v1055 = vpop.f32.mrb[0].mxu0
  %1056 = vmatprep.mubr.f32.mxu0 0.0
  %1057 = vmatmul.mubr.f32.gmra.mrb[0].mxu0 %v851
  %v1058 = vpop.f32.mrb[0].mxu0
  %v1059 = vadd.f32 %v780, %v1058
  %v1060 = vpop.f32.mrb[0].mxu0
  %1061 = vmatprep.mubr.f32.mxu0 0.0
  %1062 = vmatmul.mubr.f32.gmra.mrb[0].mxu0 %v854
  %v1063 = vpop.f32.mrb[0].mxu0
  %v1064 = vadd.f32 %v780, %v1063
  %v1065 = vpop.f32.mrb[0].mxu0
  %1066 = vmatprep.mubr.f32.mxu0 0.0
  %1067 = vmatmul.mubr.f32.gmra.mrb[0].mxu0 %v857
  %v1068 = vpop.f32.mrb[0].mxu0
  %v1069 = vadd.f32 %v780, %v1068
  %v1070 = vpop.f32.mrb[0].mxu0
  %1071 = vmatprep.mubr.f32.mxu0 0.0
  %1072 = vmatmul.mubr.f32.gmra.mrb[0].mxu0 %v860
  %v1073 = vpop.f32.mrb[0].mxu0
  %v1074 = vadd.f32 %v780, %v1073
  %v1075 = vpop.f32.mrb[0].mxu0
  %1076 = vmatprep.mubr.f32.mxu0 0.0
  %1077 = vmatmul.mubr.f32.gmra.mrb[0].mxu0 %v863
  %v1078 = vpop.f32.mrb[0].mxu0
  %v1079 = vadd.f32 %v780, %v1078
  %v1080 = vpop.f32.mrb[0].mxu0
  %1081 = vmatprep.mubr.f32.mxu0 0.0
  %1082 = vmatmul.mubr.f32.gmra.mrb[0].mxu0 %v866
  %v1083 = vpop.f32.mrb[0].mxu0
  %v1084 = vadd.f32 %v780, %v1083
  %v1085 = vpop.f32.mrb[0].mxu0
  %1086 = vmatprep.mubr.f32.mxu0 0.0
  %1087 = vmatmul.mubr.f32.gmra.mrb[0].mxu0 %v869
  %v1088 = vpop.f32.mrb[0].mxu0
  %v1089 = vadd.f32 %v780, %v1088
  %v1090 = vpop.f32.mrb[0].mxu0
  %1091 = vmatprep.mubr.f32.mxu0 0.0
  %1092 = vmatmul.mubr.f32.gmra.mrb[0].mxu0 %v872
  %v1093 = vpop.f32.mrb[0].mxu0
  %v1094 = vadd.f32 %v780, %v1093
  %v1095 = vpop.f32.mrb[0].mxu0
  %1096 = vmatprep.mubr.f32.mxu0 0.0
  %1097 = vmatmul.mubr.f32.gmra.mrb[0].mxu0 %v875
  %v1098 = vpop.f32.mrb[0].mxu0
  %v1099 = vadd.f32 %v780, %v1098
  %v1100 = vpop.f32.mrb[0].mxu0
  %1101 = vdwg.mxu0
  %v1102 = vmax.f32 %v944, 0.0
  %v1103 = vmax.f32 %v949, 0.0
  %v1104 = vmax.f32 %v954, 0.0
  %v1105 = vmax.f32 %v959, 0.0
  %v1106 = vmax.f32 %v964, 0.0
  %v1107 = vmax.f32 %v969, 0.0
  %v1108 = vmax.f32 %v974, 0.0
  %v1109 = vmax.f32 %v979, 0.0
  %v1110 = vmax.f32 %v984, 0.0
  %v1111 = vmax.f32 %v989, 0.0
  %v1112 = vmax.f32 %v994, 0.0
  %v1113 = vmax.f32 %v999, 0.0
  %v1114 = vmax.f32 %v1004, 0.0
  %v1115 = vmax.f32 %v1009, 0.0
  %v1116 = vmax.f32 %v1014, 0.0
  %v1117 = vmax.f32 %v1019, 0.0
  %v1118 = vmax.f32 %v1024, 0.0
  %v1119 = vmax.f32 %v1029, 0.0
  %v1120 = vmax.f32 %v1034, 0.0
  %v1121 = vmax.f32 %v1039, 0.0
  %v1122 = vmax.f32 %v1044, 0.0
  %v1123 = vmax.f32 %v1049, 0.0
  %v1124 = vmax.f32 %v1054, 0.0
  %v1125 = vmax.f32 %v1059, 0.0
  %v1126 = vmax.f32 %v1064, 0.0
  %v1127 = vmax.f32 %v1069, 0.0
  %v1128 = vmax.f32 %v1074, 0.0
  %v1129 = vmax.f32 %v1079, 0.0
  %v1130 = vmax.f32 %v1084, 0.0
  %v1131 = vmax.f32 %v1089, 0.0
  %v1132 = vmax.f32 %v1094, 0.0
  %v1133 = vmax.f32 %v1099, 0.0
  %v1134 = vadd.f32 %v1102, %v1110
  %v1135 = vadd.f32 %v1103, %v1111
  %v1136 = vadd.f32 %v1104, %v1112
  %v1137 = vadd.f32 %v1105, %v1113
  %v1138 = vadd.f32 %v1106, %v1114
  %v1139 = vadd.f32 %v1107, %v1115
  %v1140 = vadd.f32 %v1108, %v1116
  %v1141 = vadd.f32 %v1109, %v1117
  %v1142 = vadd.f32 %v1134, %v1118
  %v1143 = vadd.f32 %v1135, %v1119
  %v1144 = vadd.f32 %v1136, %v1120
  %v1145 = vadd.f32 %v1137, %v1121
  %v1146 = vadd.f32 %v1138, %v1122
  %v1147 = vadd.f32 %v1139, %v1123
  %v1148 = vadd.f32 %v1140, %v1124
  %v1149 = vadd.f32 %v1141, %v1125
  %v1150 = vadd.f32 %v1142, %v1126
  %v1151 = vadd.f32 %v1143, %v1127
  %v1152 = vadd.f32 %v1144, %v1128
  %v1153 = vadd.f32 %v1145, %v1129
  %v1154 = vadd.f32 %v1146, %v1130
  %v1155 = vadd.f32 %v1147, %v1131
  %v1156 = vadd.f32 %v1148, %v1132
  %v1157 = vadd.f32 %v1149, %v1133
  %v1158 = vmul.f32 %v1150, 0.25
  %v1159 = vmul.f32 %v1151, 0.25
  %v1160 = vmul.f32 %v1152, 0.25
  %v1161 = vmul.f32 %v1153, 0.25
  %v1162 = vmul.f32 %v1154, 0.25
  %v1163 = vmul.f32 %v1155, 0.25
  %v1164 = vmul.f32 %v1156, 0.25
  %v1165 = vmul.f32 %v1157, 0.25
  %v1166 = vld [vmem:[%s1 + $0x60] sm:$0xff]
  %v1167 = vld [vmem:[%s1 + $0x68] sm:$0xff]
  %v1168 = vld [vmem:[%s1 + $0x70] sm:$0xff]
  %v1169 = vld [vmem:[%s1 + $0x78] sm:$0xff]
  %v1170 = vld [vmem:[%s1 + $0x80] sm:$0x1]
  %v1171 = vlaneseq
  %v1172 = vshrl.u32 %v1171, 7
  %v1173 = vsub.s32 0, %v1172
  %v1174 = vrot.slane %v1170, %v1173
  %v1176 = vsel %vm418, %v1158, 0
  %v1179 = vsel %vm418, %v1159, 0
  %v1182 = vsel %vm418, %v1160, 0
  %v1185 = vsel %vm418, %v1161, 0
  %v1188 = vsel %vm418, %v1162, 0
  %v1191 = vsel %vm418, %v1163, 0
  %v1194 = vsel %vm418, %v1164, 0
  %v1197 = vsel %vm418, %v1165, 0
  %1199 = vmatprep.subr.mxu0 0.0
  %1200 = vmatpush1.msra.mxu0 %v1166
  %1201 = vmatprep.subr.mxu0 0.0
  %1202 = vmatpush1.msra.mxu0 %v1167
  %1203 = vmatprep.subr.mxu0 0.0
  %1204 = vmatpush1.msra.mxu0 %v1168
  %1205 = vmatprep.subr.mxu0 0.0
  %1206 = vmatpush1.msra.mxu0 %v1169
  %1207 = vmatprep.subr.mxu0 0.0
  %1208 = vmatpush1.msra.mxu0 0.0
  %1209 = vmatprep.subr.mxu0 0.0
  %1210 = vmatpush1.msra.mxu0 0.0
  %1211 = vmatprep.subr.mxu0 0.0
  %1212 = vmatpush1.msra.mxu0 0.0
  %1213 = vmatprep.subr.mxu0 0.0
  %1214 = vmatpush1.msra.mxu0 0.0
  %1215 = vmatprep.subr.mxu0 0.0
  %1216 = vmatpush1.msra.mxu0 0.0
  %1217 = vmatprep.subr.mxu0 0.0
  %1218 = vmatpush1.msra.mxu0 0.0
  %1219 = vmatprep.subr.mxu0 0.0
  %1220 = vmatpush1.msra.mxu0 0.0
  %1221 = vmatprep.subr.mxu0 0.0
  %1222 = vmatpush1.msra.mxu0 0.0
  %1223 = vmatprep.subr.mxu0 0.0
  %1224 = vmatpush1.msra.mxu0 0.0
  %1225 = vmatprep.subr.mxu0 0.0
  %1226 = vmatpush1.msra.mxu0 0.0
  %1227 = vmatprep.subr.mxu0 0.0
  %1228 = vmatpush1.msra.mxu0 0.0
  %1229 = vmatprep.subr.mxu0 0.0
  %1230 = vmatpush1.msra.mxu0 0.0
  %1231 = vmatprep.subr.mxu0 0.0
  %1232 = vmatpush1.msra.mxu0 0.0
  %1233 = vmatprep.subr.mxu0 0.0
  %1234 = vmatpush1.msra.mxu0 0.0
  %1235 = vmatprep.subr.mxu0 0.0
  %1236 = vmatpush1.msra.mxu0 0.0
  %1237 = vmatprep.subr.mxu0 0.0
  %1238 = vmatpush1.msra.mxu0 0.0
  %1239 = vmatprep.subr.mxu0 0.0
  %1240 = vmatpush1.msra.mxu0 0.0
  %1241 = vmatprep.subr.mxu0 0.0
  %1242 = vmatpush1.msra.mxu0 0.0
  %1243 = vmatprep.subr.mxu0 0.0
  %1244 = vmatpush1.msra.mxu0 0.0
  %1245 = vmatprep.subr.mxu0 0.0
  %1246 = vmatpush1.msra.mxu0 0.0
  %1247 = vmatprep.subr.mxu0 0.0
  %1248 = vmatpush1.msra.mxu0 0.0
  %1249 = vmatprep.subr.mxu0 0.0
  %1250 = vmatpush1.msra.mxu0 0.0
  %1251 = vmatprep.subr.mxu0 0.0
  %1252 = vmatpush1.msra.mxu0 0.0
  %1253 = vmatprep.subr.mxu0 0.0
  %1254 = vmatpush1.msra.mxu0 0.0
  %1255 = vmatprep.subr.mxu0 0.0
  %1256 = vmatpush1.msra.mxu0 0.0
  %1257 = vmatprep.subr.mxu0 0.0
  %1258 = vmatpush1.msra.mxu0 0.0
  %1259 = vmatprep.subr.mxu0 0.0
  %1260 = vmatpush1.msra.mxu0 0.0
  %1261 = vmatprep.subr.mxu0 0.0
  %1262 = vmatpush1.msra.mxu0 0.0
  %1263 = vmatprep.mubr.f32.mxu0 0.0
  %1264 = vmatmul.mubr.f32.gmra.mrb[0].mxu0 %v1176
  %v1265 = vpop.f32.mrb[0].mxu0
  %v1266 = vadd.f32 %v1174, %v1265
  %v1267 = vpop.f32.mrb[0].mxu0
  %1268 = vmatprep.mubr.f32.mxu0 0.0
  %1269 = vmatmul.mubr.f32.gmra.mrb[0].mxu0 %v1179
  %v1270 = vpop.f32.mrb[0].mxu0
  %v1271 = vadd.f32 %v1174, %v1270
  %v1272 = vpop.f32.mrb[0].mxu0
  %1273 = vmatprep.mubr.f32.mxu0 0.0
  %1274 = vmatmul.mubr.f32.gmra.mrb[0].mxu0 %v1182
  %v1275 = vpop.f32.mrb[0].mxu0
  %v1276 = vadd.f32 %v1174, %v1275
  %v1277 = vpop.f32.mrb[0].mxu0
  %1278 = vmatprep.mubr.f32.mxu0 0.0
  %1279 = vmatmul.mubr.f32.gmra.mrb[0].mxu0 %v1185
  %v1280 = vpop.f32.mrb[0].mxu0
  %v1281 = vadd.f32 %v1174, %v1280
  %v1282 = vpop.f32.mrb[0].mxu0
  %1283 = vmatprep.mubr.f32.mxu0 0.0
  %1284 = vmatmul.mubr.f32.gmra.mrb[0].mxu0 %v1188
  %v1285 = vpop.f32.mrb[0].mxu0
  %v1286 = vadd.f32 %v1174, %v1285
  %v1287 = vpop.f32.mrb[0].mxu0
  %1288 = vmatprep.mubr.f32.mxu0 0.0
  %1289 = vmatmul.mubr.f32.gmra.mrb[0].mxu0 %v1191
  %v1290 = vpop.f32.mrb[0].mxu0
  %v1291 = vadd.f32 %v1174, %v1290
  %v1292 = vpop.f32.mrb[0].mxu0
  %1293 = vmatprep.mubr.f32.mxu0 0.0
  %1294 = vmatmul.mubr.f32.gmra.mrb[0].mxu0 %v1194
  %v1295 = vpop.f32.mrb[0].mxu0
  %v1296 = vadd.f32 %v1174, %v1295
  %v1297 = vpop.f32.mrb[0].mxu0
  %1298 = vmatprep.mubr.f32.mxu0 0.0
  %1299 = vmatmul.mubr.f32.gmra.mrb[0].mxu0 %v1197
  %v1300 = vpop.f32.mrb[0].mxu0
  %v1301 = vadd.f32 %v1174, %v1300
  %v1302 = vpop.f32.mrb[0].mxu0
  %1303 = vdwg.mxu0
  %v1304 = vmax.f32 %v1266, 0.0
  %v1305 = vmax.f32 %v1271, 0.0
  %v1306 = vmax.f32 %v1276, 0.0
  %v1307 = vmax.f32 %v1281, 0.0
  %v1308 = vmax.f32 %v1286, 0.0
  %v1309 = vmax.f32 %v1291, 0.0
  %v1310 = vmax.f32 %v1296, 0.0
  %v1311 = vmax.f32 %v1301, 0.0
  %v1312 = vld [vmem:[%s1 + $0x88] sm:$0xff]
  %v1313 = vld [vmem:[%s1 + $0x90] sm:$0xff]
  %v1314 = vld [vmem:[%s1 + $0x98] sm:$0xff]
  %v1315 = vld [vmem:[%s1 + $0xa0] sm:$0xff]
  %v1316 = vld [vmem:[%s1 + $0xa8] sm:$0xff]
  %v1317 = vld [vmem:[%s1 + $0xb0] sm:$0xff]
  %v1318 = vld [vmem:[%s1 + $0xb8] sm:$0xff]
  %v1319 = vld [vmem:[%s1 + $0xc0] sm:$0xff]
  %v1320 = vld [vmem:[%s1 + $0xc8] sm:$0x1]
  %v1321 = vlaneseq
  %v1322 = vshrl.u32 %v1321, 7
  %v1323 = vsub.s32 0, %v1322
  %v1324 = vrot.slane %v1320, %v1323
  %vm1325 = vcmask 523264
  %v1327 = vsel %vm1325, %v1304, 0
  %v1330 = vsel %vm1325, %v1305, 0
  %v1333 = vsel %vm1325, %v1306, 0
  %v1336 = vsel %vm1325, %v1307, 0
  %v1339 = vsel %vm1325, %v1308, 0
  %v1342 = vsel %vm1325, %v1309, 0
  %v1345 = vsel %vm1325, %v1310, 0
  %v1348 = vsel %vm1325, %v1311, 0
  %1350 = vmatprep.subr.mxu0 0.0
  %1351 = vmatpush1.msra.mxu0 %v1312
  %1352 = vmatprep.subr.mxu0 0.0
  %1353 = vmatpush1.msra.mxu0 %v1313
  %1354 = vmatprep.subr.mxu0 0.0
  %1355 = vmatpush1.msra.mxu0 %v1314
  %1356 = vmatprep.subr.mxu0 0.0
  %1357 = vmatpush1.msra.mxu0 %v1315
  %1358 = vmatprep.subr.mxu0 0.0
  %1359 = vmatpush1.msra.mxu0 %v1316
  %1360 = vmatprep.subr.mxu0 0.0
  %1361 = vmatpush1.msra.mxu0 %v1317
  %1362 = vmatprep.subr.mxu0 0.0
  %1363 = vmatpush1.msra.mxu0 %v1318
  %1364 = vmatprep.subr.mxu0 0.0
  %1365 = vmatpush1.msra.mxu0 %v1319
  %1366 = vmatprep.subr.mxu0 0.0
  %1367 = vmatpush1.msra.mxu0 0.0
  %1368 = vmatprep.subr.mxu0 0.0
  %1369 = vmatpush1.msra.mxu0 0.0
  %1370 = vmatprep.subr.mxu0 0.0
  %1371 = vmatpush1.msra.mxu0 0.0
  %1372 = vmatprep.subr.mxu0 0.0
  %1373 = vmatpush1.msra.mxu0 0.0
  %1374 = vmatprep.subr.mxu0 0.0
  %1375 = vmatpush1.msra.mxu0 0.0
  %1376 = vmatprep.subr.mxu0 0.0
  %1377 = vmatpush1.msra.mxu0 0.0
  %1378 = vmatprep.subr.mxu0 0.0
  %1379 = vmatpush1.msra.mxu0 0.0
  %1380 = vmatprep.subr.mxu0 0.0
  %1381 = vmatpush1.msra.mxu0 0.0
  %1382 = vmatprep.subr.mxu0 0.0
  %1383 = vmatpush1.msra.mxu0 0.0
  %1384 = vmatprep.subr.mxu0 0.0
  %1385 = vmatpush1.msra.mxu0 0.0
  %1386 = vmatprep.subr.mxu0 0.0
  %1387 = vmatpush1.msra.mxu0 0.0
  %1388 = vmatprep.subr.mxu0 0.0
  %1389 = vmatpush1.msra.mxu0 0.0
  %1390 = vmatprep.subr.mxu0 0.0
  %1391 = vmatpush1.msra.mxu0 0.0
  %1392 = vmatprep.subr.mxu0 0.0
  %1393 = vmatpush1.msra.mxu0 0.0
  %1394 = vmatprep.subr.mxu0 0.0
  %1395 = vmatpush1.msra.mxu0 0.0
  %1396 = vmatprep.subr.mxu0 0.0
  %1397 = vmatpush1.msra.mxu0 0.0
  %1398 = vmatprep.subr.mxu0 0.0
  %1399 = vmatpush1.msra.mxu0 0.0
  %1400 = vmatprep.subr.mxu0 0.0
  %1401 = vmatpush1.msra.mxu0 0.0
  %1402 = vmatprep.subr.mxu0 0.0
  %1403 = vmatpush1.msra.mxu0 0.0
  %1404 = vmatprep.subr.mxu0 0.0
  %1405 = vmatpush1.msra.mxu0 0.0
  %1406 = vmatprep.subr.mxu0 0.0
  %1407 = vmatpush1.msra.mxu0 0.0
  %1408 = vmatprep.subr.mxu0 0.0
  %1409 = vmatpush1.msra.mxu0 0.0
  %1410 = vmatprep.subr.mxu0 0.0
  %1411 = vmatpush1.msra.mxu0 0.0
  %1412 = vmatprep.subr.mxu0 0.0
  %1413 = vmatpush1.msra.mxu0 0.0
  %1414 = vmatprep.mubr.f32.mxu0 0.0
  %1415 = vmatmul.mubr.f32.gmra.mrb[0].mxu0 %v1327
  %v1416 = vpop.f32.mrb[0].mxu0
  %v1417 = vadd.f32 %v1324, %v1416
  %v1418 = vpop.f32.mrb[0].mxu0
  %1419 = vmatprep.mubr.f32.mxu0 0.0
  %1420 = vmatmul.mubr.f32.gmra.mrb[0].mxu0 %v1330
  %v1421 = vpop.f32.mrb[0].mxu0
  %v1422 = vadd.f32 %v1324, %v1421
  %v1423 = vpop.f32.mrb[0].mxu0
  %1424 = vmatprep.mubr.f32.mxu0 0.0
  %1425 = vmatmul.mubr.f32.gmra.mrb[0].mxu0 %v1333
  %v1426 = vpop.f32.mrb[0].mxu0
  %v1427 = vadd.f32 %v1324, %v1426
  %v1428 = vpop.f32.mrb[0].mxu0
  %1429 = vmatprep.mubr.f32.mxu0 0.0
  %1430 = vmatmul.mubr.f32.gmra.mrb[0].mxu0 %v1336
  %v1431 = vpop.f32.mrb[0].mxu0
  %v1432 = vadd.f32 %v1324, %v1431
  %v1433 = vpop.f32.mrb[0].mxu0
  %1434 = vmatprep.mubr.f32.mxu0 0.0
  %1435 = vmatmul.mubr.f32.gmra.mrb[0].mxu0 %v1339
  %v1436 = vpop.f32.mrb[0].mxu0
  %v1437 = vadd.f32 %v1324, %v1436
  %v1438 = vpop.f32.mrb[0].mxu0
  %1439 = vmatprep.mubr.f32.mxu0 0.0
  %1440 = vmatmul.mubr.f32.gmra.mrb[0].mxu0 %v1342
  %v1441 = vpop.f32.mrb[0].mxu0
  %v1442 = vadd.f32 %v1324, %v1441
  %v1443 = vpop.f32.mrb[0].mxu0
  %1444 = vmatprep.mubr.f32.mxu0 0.0
  %1445 = vmatmul.mubr.f32.gmra.mrb[0].mxu0 %v1345
  %v1446 = vpop.f32.mrb[0].mxu0
  %v1447 = vadd.f32 %v1324, %v1446
  %v1448 = vpop.f32.mrb[0].mxu0
  %1449 = vmatprep.mubr.f32.mxu0 0.0
  %1450 = vmatmul.mubr.f32.gmra.mrb[0].mxu0 %v1348
  %v1451 = vpop.f32.mrb[0].mxu0
  %v1452 = vadd.f32 %v1324, %v1451
  %v1453 = vpop.f32.mrb[0].mxu0
  %1454 = vdwg.mxu0
  %vm1455 = vcmask 7168
  %1456 = vst.msk [vmem:[%s3] sm:$0xff] %vm1455, %v1417
  %1457 = vst.msk [vmem:[%s3 + $0x8] sm:$0xff] %vm1455, %v1422
  %1458 = vst.msk [vmem:[%s3 + $0x10] sm:$0xff] %vm1455, %v1427
  %1459 = vst.msk [vmem:[%s3 + $0x18] sm:$0xff] %vm1455, %v1432
  %1460 = vst.msk [vmem:[%s3 + $0x20] sm:$0xff] %vm1455, %v1437
  %1461 = vst.msk [vmem:[%s3 + $0x28] sm:$0xff] %vm1455, %v1442
  %1462 = vst.msk [vmem:[%s3 + $0x30] sm:$0xff] %vm1455, %v1447
  %1463 = vst.msk [vmem:[%s3 + $0x38] sm:$0xff] %vm1455, %v1452
  %v1464 = vld [vmem:[%s1 + $0xf0] sm:$0xff]
  %v1465 = vld [vmem:[%s1 + $0xf8] sm:$0xff]
  %v1466 = vld [vmem:[%s1 + $0x100] sm:$0xff]
  %v1467 = vld [vmem:[%s1 + $0x108] sm:$0xff]
  %v1468 = vld [vmem:[%s1 + $0x110] sm:$0xff]
  %v1469 = vld [vmem:[%s1 + $0x118] sm:$0xff]
  %v1470 = vld [vmem:[%s1 + $0x120] sm:$0xff]
  %v1471 = vld [vmem:[%s1 + $0x128] sm:$0xff]
  %1472 = vmatprep.subr.mxu0 0.0
  %1473 = vmatpush1.msra.mxu0 %v1464
  %1474 = vmatprep.subr.mxu0 0.0
  %1475 = vmatpush1.msra.mxu0 %v1465
  %1476 = vmatprep.subr.mxu0 0.0
  %1477 = vmatpush1.msra.mxu0 %v1466
  %1478 = vmatprep.subr.mxu0 0.0
  %1479 = vmatpush1.msra.mxu0 %v1467
  %1480 = vmatprep.subr.mxu0 0.0
  %1481 = vmatpush1.msra.mxu0 %v1468
  %1482 = vmatprep.subr.mxu0 0.0
  %1483 = vmatpush1.msra.mxu0 %v1469
  %1484 = vmatprep.subr.mxu0 0.0
  %1485 = vmatpush1.msra.mxu0 %v1470
  %1486 = vmatprep.subr.mxu0 0.0
  %1487 = vmatpush1.msra.mxu0 %v1471
  %1488 = vmatprep.subr.mxu0 0.0
  %1489 = vmatpush1.msra.mxu0 0.0
  %1490 = vmatprep.subr.mxu0 0.0
  %1491 = vmatpush1.msra.mxu0 0.0
  %1492 = vmatprep.subr.mxu0 0.0
  %1493 = vmatpush1.msra.mxu0 0.0
  %1494 = vmatprep.subr.mxu0 0.0
  %1495 = vmatpush1.msra.mxu0 0.0
  %1496 = vmatprep.subr.mxu0 0.0
  %1497 = vmatpush1.msra.mxu0 0.0
  %1498 = vmatprep.subr.mxu0 0.0
  %1499 = vmatpush1.msra.mxu0 0.0
  %1500 = vmatprep.subr.mxu0 0.0
  %1501 = vmatpush1.msra.mxu0 0.0
  %1502 = vmatprep.subr.mxu0 0.0
  %1503 = vmatpush1.msra.mxu0 0.0
  %1504 = vmatprep.subr.mxu0 0.0
  %1505 = vmatpush1.msra.mxu0 0.0
  %1506 = vmatprep.subr.mxu0 0.0
  %1507 = vmatpush1.msra.mxu0 0.0
  %1508 = vmatprep.subr.mxu0 0.0
  %1509 = vmatpush1.msra.mxu0 0.0
  %1510 = vmatprep.subr.mxu0 0.0
  %1511 = vmatpush1.msra.mxu0 0.0
  %1512 = vmatprep.subr.mxu0 0.0
  %1513 = vmatpush1.msra.mxu0 0.0
  %1514 = vmatprep.subr.mxu0 0.0
  %1515 = vmatpush1.msra.mxu0 0.0
  %1516 = vmatprep.subr.mxu0 0.0
  %1517 = vmatpush1.msra.mxu0 0.0
  %1518 = vmatprep.subr.mxu0 0.0
  %1519 = vmatpush1.msra.mxu0 0.0
  %1520 = vmatprep.subr.mxu0 0.0
  %1521 = vmatpush1.msra.mxu0 0.0
  %1522 = vmatprep.subr.mxu0 0.0
  %1523 = vmatpush1.msra.mxu0 0.0
  %1524 = vmatprep.subr.mxu0 0.0
  %1525 = vmatpush1.msra.mxu0 0.0
  %1526 = vmatprep.subr.mxu0 0.0
  %1527 = vmatpush1.msra.mxu0 0.0
  %1528 = vmatprep.subr.mxu0 0.0
  %1529 = vmatpush1.msra.mxu0 0.0
  %1530 = vmatprep.subr.mxu0 0.0
  %1531 = vmatpush1.msra.mxu0 0.0
  %1532 = vmatprep.subr.mxu0 0.0
  %1533 = vmatpush1.msra.mxu0 0.0
  %1534 = vmatprep.subr.mxu0 0.0
  %1535 = vmatpush1.msra.mxu0 0.0
  %1536 = vmatprep.mubr.f32.mxu0 0.0
  %1537 = vmatmul.mubr.f32.gmra.mrb[0].mxu0 %v1327
  %v1538 = vpop.f32.mrb[0].mxu0
  %v1539 = vadd.f32 0.0, %v1538
  %v1540 = vpop.f32.mrb[0].mxu0
  %1541 = vmatprep.mubr.f32.mxu0 0.0
  %1542 = vmatmul.mubr.f32.gmra.mrb[0].mxu0 %v1330
  %v1543 = vpop.f32.mrb[0].mxu0
  %v1544 = vadd.f32 0.0, %v1543
  %v1545 = vpop.f32.mrb[0].mxu0
  %1546 = vmatprep.mubr.f32.mxu0 0.0
  %1547 = vmatmul.mubr.f32.gmra.mrb[0].mxu0 %v1333
  %v1548 = vpop.f32.mrb[0].mxu0
  %v1549 = vadd.f32 0.0, %v1548
  %v1550 = vpop.f32.mrb[0].mxu0
  %1551 = vmatprep.mubr.f32.mxu0 0.0
  %1552 = vmatmul.mubr.f32.gmra.mrb[0].mxu0 %v1336
  %v1553 = vpop.f32.mrb[0].mxu0
  %v1554 = vadd.f32 0.0, %v1553
  %v1555 = vpop.f32.mrb[0].mxu0
  %1556 = vmatprep.mubr.f32.mxu0 0.0
  %1557 = vmatmul.mubr.f32.gmra.mrb[0].mxu0 %v1339
  %v1558 = vpop.f32.mrb[0].mxu0
  %v1559 = vadd.f32 0.0, %v1558
  %v1560 = vpop.f32.mrb[0].mxu0
  %1561 = vmatprep.mubr.f32.mxu0 0.0
  %1562 = vmatmul.mubr.f32.gmra.mrb[0].mxu0 %v1342
  %v1563 = vpop.f32.mrb[0].mxu0
  %v1564 = vadd.f32 0.0, %v1563
  %v1565 = vpop.f32.mrb[0].mxu0
  %1566 = vmatprep.mubr.f32.mxu0 0.0
  %1567 = vmatmul.mubr.f32.gmra.mrb[0].mxu0 %v1345
  %v1568 = vpop.f32.mrb[0].mxu0
  %v1569 = vadd.f32 0.0, %v1568
  %v1570 = vpop.f32.mrb[0].mxu0
  %1571 = vmatprep.mubr.f32.mxu0 0.0
  %1572 = vmatmul.mubr.f32.gmra.mrb[0].mxu0 %v1348
  %v1573 = vpop.f32.mrb[0].mxu0
  %v1574 = vadd.f32 0.0, %v1573
  %v1575 = vpop.f32.mrb[0].mxu0
  %1576 = vdwg.mxu0
  %v1577 = vld [vmem:[%s1 + $0xd0] sm:$0xff]
  %v1578 = vld [vmem:[%s1 + $0xd8] sm:$0xff]
  %v1579 = vld [vmem:[%s1 + $0xe0] sm:$0xff]
  %v1580 = vld [vmem:[%s1 + $0xe8] sm:$0xff]
  %v1582 = vsel %vm418, %v1102, 0
  %v1585 = vsel %vm418, %v1103, 0
  %v1588 = vsel %vm418, %v1104, 0
  %v1591 = vsel %vm418, %v1105, 0
  %v1594 = vsel %vm418, %v1106, 0
  %v1597 = vsel %vm418, %v1107, 0
  %v1600 = vsel %vm418, %v1108, 0
  %v1603 = vsel %vm418, %v1109, 0
  %v1606 = vsel %vm418, %v1110, 0
  %v1609 = vsel %vm418, %v1111, 0
  %v1612 = vsel %vm418, %v1112, 0
  %v1615 = vsel %vm418, %v1113, 0
  %v1618 = vsel %vm418, %v1114, 0
  %v1621 = vsel %vm418, %v1115, 0
  %v1624 = vsel %vm418, %v1116, 0
  %v1627 = vsel %vm418, %v1117, 0
  %v1630 = vsel %vm418, %v1118, 0
  %v1633 = vsel %vm418, %v1119, 0
  %v1636 = vsel %vm418, %v1120, 0
  %v1639 = vsel %vm418, %v1121, 0
  %v1642 = vsel %vm418, %v1122, 0
  %v1645 = vsel %vm418, %v1123, 0
  %v1648 = vsel %vm418, %v1124, 0
  %v1651 = vsel %vm418, %v1125, 0
  %v1654 = vsel %vm418, %v1126, 0
  %v1657 = vsel %vm418, %v1127, 0
  %v1660 = vsel %vm418, %v1128, 0
  %v1663 = vsel %vm418, %v1129, 0
  %v1666 = vsel %vm418, %v1130, 0
  %v1669 = vsel %vm418, %v1131, 0
  %v1672 = vsel %vm418, %v1132, 0
  %v1675 = vsel %vm418, %v1133, 0
  %1677 = vmatprep.subr.mxu0 0.0
  %1678 = vmatpush1.msra.mxu0 %v1577
  %1679 = vmatprep.subr.mxu0 0.0
  %1680 = vmatpush1.msra.mxu0 %v1578
  %1681 = vmatprep.subr.mxu0 0.0
  %1682 = vmatpush1.msra.mxu0 %v1579
  %1683 = vmatprep.subr.mxu0 0.0
  %1684 = vmatpush1.msra.mxu0 %v1580
  %1685 = vmatprep.subr.mxu0 0.0
  %1686 = vmatpush1.msra.mxu0 0.0
  %1687 = vmatprep.subr.mxu0 0.0
  %1688 = vmatpush1.msra.mxu0 0.0
  %1689 = vmatprep.subr.mxu0 0.0
  %1690 = vmatpush1.msra.mxu0 0.0
  %1691 = vmatprep.subr.mxu0 0.0
  %1692 = vmatpush1.msra.mxu0 0.0
  %1693 = vmatprep.subr.mxu0 0.0
  %1694 = vmatpush1.msra.mxu0 0.0
  %1695 = vmatprep.subr.mxu0 0.0
  %1696 = vmatpush1.msra.mxu0 0.0
  %1697 = vmatprep.subr.mxu0 0.0
  %1698 = vmatpush1.msra.mxu0 0.0
  %1699 = vmatprep.subr.mxu0 0.0
  %1700 = vmatpush1.msra.mxu0 0.0
  %1701 = vmatprep.subr.mxu0 0.0
  %1702 = vmatpush1.msra.mxu0 0.0
  %1703 = vmatprep.subr.mxu0 0.0
  %1704 = vmatpush1.msra.mxu0 0.0
  %1705 = vmatprep.subr.mxu0 0.0
  %1706 = vmatpush1.msra.mxu0 0.0
  %1707 = vmatprep.subr.mxu0 0.0
  %1708 = vmatpush1.msra.mxu0 0.0
  %1709 = vmatprep.subr.mxu0 0.0
  %1710 = vmatpush1.msra.mxu0 0.0
  %1711 = vmatprep.subr.mxu0 0.0
  %1712 = vmatpush1.msra.mxu0 0.0
  %1713 = vmatprep.subr.mxu0 0.0
  %1714 = vmatpush1.msra.mxu0 0.0
  %1715 = vmatprep.subr.mxu0 0.0
  %1716 = vmatpush1.msra.mxu0 0.0
  %1717 = vmatprep.subr.mxu0 0.0
  %1718 = vmatpush1.msra.mxu0 0.0
  %1719 = vmatprep.subr.mxu0 0.0
  %1720 = vmatpush1.msra.mxu0 0.0
  %1721 = vmatprep.subr.mxu0 0.0
  %1722 = vmatpush1.msra.mxu0 0.0
  %1723 = vmatprep.subr.mxu0 0.0
  %1724 = vmatpush1.msra.mxu0 0.0
  %1725 = vmatprep.subr.mxu0 0.0
  %1726 = vmatpush1.msra.mxu0 0.0
  %1727 = vmatprep.subr.mxu0 0.0
  %1728 = vmatpush1.msra.mxu0 0.0
  %1729 = vmatprep.subr.mxu0 0.0
  %1730 = vmatpush1.msra.mxu0 0.0
  %1731 = vmatprep.subr.mxu0 0.0
  %1732 = vmatpush1.msra.mxu0 0.0
  %1733 = vmatprep.subr.mxu0 0.0
  %1734 = vmatpush1.msra.mxu0 0.0
  %1735 = vmatprep.subr.mxu0 0.0
  %1736 = vmatpush1.msra.mxu0 0.0
  %1737 = vmatprep.subr.mxu0 0.0
  %1738 = vmatpush1.msra.mxu0 0.0
  %1739 = vmatprep.subr.mxu0 0.0
  %1740 = vmatpush1.msra.mxu0 0.0
  %1741 = vmatprep.mubr.f32.mxu0 0.0
  %1742 = vmatmul.mubr.f32.gmra.mrb[0].mxu0 %v1582
  %v1743 = vpop.f32.mrb[0].mxu0
  %v1744 = vadd.f32 %v1539, %v1743
  %v1745 = vpop.f32.mrb[0].mxu0
  %1746 = vmatprep.mubr.f32.mxu0 0.0
  %1747 = vmatmul.mubr.f32.gmra.mrb[0].mxu0 %v1585
  %v1748 = vpop.f32.mrb[0].mxu0
  %v1749 = vadd.f32 %v1544, %v1748
  %v1750 = vpop.f32.mrb[0].mxu0
  %1751 = vmatprep.mubr.f32.mxu0 0.0
  %1752 = vmatmul.mubr.f32.gmra.mrb[0].mxu0 %v1588
  %v1753 = vpop.f32.mrb[0].mxu0
  %v1754 = vadd.f32 %v1549, %v1753
  %v1755 = vpop.f32.mrb[0].mxu0
  %1756 = vmatprep.mubr.f32.mxu0 0.0
  %1757 = vmatmul.mubr.f32.gmra.mrb[0].mxu0 %v1591
  %v1758 = vpop.f32.mrb[0].mxu0
  %v1759 = vadd.f32 %v1554, %v1758
  %v1760 = vpop.f32.mrb[0].mxu0
  %1761 = vmatprep.mubr.f32.mxu0 0.0
  %1762 = vmatmul.mubr.f32.gmra.mrb[0].mxu0 %v1594
  %v1763 = vpop.f32.mrb[0].mxu0
  %v1764 = vadd.f32 %v1559, %v1763
  %v1765 = vpop.f32.mrb[0].mxu0
  %1766 = vmatprep.mubr.f32.mxu0 0.0
  %1767 = vmatmul.mubr.f32.gmra.mrb[0].mxu0 %v1597
  %v1768 = vpop.f32.mrb[0].mxu0
  %v1769 = vadd.f32 %v1564, %v1768
  %v1770 = vpop.f32.mrb[0].mxu0
  %1771 = vmatprep.mubr.f32.mxu0 0.0
  %1772 = vmatmul.mubr.f32.gmra.mrb[0].mxu0 %v1600
  %v1773 = vpop.f32.mrb[0].mxu0
  %v1774 = vadd.f32 %v1569, %v1773
  %v1775 = vpop.f32.mrb[0].mxu0
  %1776 = vmatprep.mubr.f32.mxu0 0.0
  %1777 = vmatmul.mubr.f32.gmra.mrb[0].mxu0 %v1603
  %v1778 = vpop.f32.mrb[0].mxu0
  %v1779 = vadd.f32 %v1574, %v1778
  %v1780 = vpop.f32.mrb[0].mxu0
  %1781 = vmatprep.mubr.f32.mxu0 0.0
  %1782 = vmatmul.mubr.f32.gmra.mrb[0].mxu0 %v1606
  %v1783 = vpop.f32.mrb[0].mxu0
  %v1784 = vadd.f32 %v1539, %v1783
  %v1785 = vpop.f32.mrb[0].mxu0
  %1786 = vmatprep.mubr.f32.mxu0 0.0
  %1787 = vmatmul.mubr.f32.gmra.mrb[0].mxu0 %v1609
  %v1788 = vpop.f32.mrb[0].mxu0
  %v1789 = vadd.f32 %v1544, %v1788
  %v1790 = vpop.f32.mrb[0].mxu0
  %1791 = vmatprep.mubr.f32.mxu0 0.0
  %1792 = vmatmul.mubr.f32.gmra.mrb[0].mxu0 %v1612
  %v1793 = vpop.f32.mrb[0].mxu0
  %v1794 = vadd.f32 %v1549, %v1793
  %v1795 = vpop.f32.mrb[0].mxu0
  %1796 = vmatprep.mubr.f32.mxu0 0.0
  %1797 = vmatmul.mubr.f32.gmra.mrb[0].mxu0 %v1615
  %v1798 = vpop.f32.mrb[0].mxu0
  %v1799 = vadd.f32 %v1554, %v1798
  %v1800 = vpop.f32.mrb[0].mxu0
  %1801 = vmatprep.mubr.f32.mxu0 0.0
  %1802 = vmatmul.mubr.f32.gmra.mrb[0].mxu0 %v1618
  %v1803 = vpop.f32.mrb[0].mxu0
  %v1804 = vadd.f32 %v1559, %v1803
  %v1805 = vpop.f32.mrb[0].mxu0
  %1806 = vmatprep.mubr.f32.mxu0 0.0
  %1807 = vmatmul.mubr.f32.gmra.mrb[0].mxu0 %v1621
  %v1808 = vpop.f32.mrb[0].mxu0
  %v1809 = vadd.f32 %v1564, %v1808
  %v1810 = vpop.f32.mrb[0].mxu0
  %1811 = vmatprep.mubr.f32.mxu0 0.0
  %1812 = vmatmul.mubr.f32.gmra.mrb[0].mxu0 %v1624
  %v1813 = vpop.f32.mrb[0].mxu0
  %v1814 = vadd.f32 %v1569, %v1813
  %v1815 = vpop.f32.mrb[0].mxu0
  %1816 = vmatprep.mubr.f32.mxu0 0.0
  %1817 = vmatmul.mubr.f32.gmra.mrb[0].mxu0 %v1627
  %v1818 = vpop.f32.mrb[0].mxu0
  %v1819 = vadd.f32 %v1574, %v1818
  %v1820 = vpop.f32.mrb[0].mxu0
  %1821 = vmatprep.mubr.f32.mxu0 0.0
  %1822 = vmatmul.mubr.f32.gmra.mrb[0].mxu0 %v1630
  %v1823 = vpop.f32.mrb[0].mxu0
  %v1824 = vadd.f32 %v1539, %v1823
  %v1825 = vpop.f32.mrb[0].mxu0
  %1826 = vmatprep.mubr.f32.mxu0 0.0
  %1827 = vmatmul.mubr.f32.gmra.mrb[0].mxu0 %v1633
  %v1828 = vpop.f32.mrb[0].mxu0
  %v1829 = vadd.f32 %v1544, %v1828
  %v1830 = vpop.f32.mrb[0].mxu0
  %1831 = vmatprep.mubr.f32.mxu0 0.0
  %1832 = vmatmul.mubr.f32.gmra.mrb[0].mxu0 %v1636
  %v1833 = vpop.f32.mrb[0].mxu0
  %v1834 = vadd.f32 %v1549, %v1833
  %v1835 = vpop.f32.mrb[0].mxu0
  %1836 = vmatprep.mubr.f32.mxu0 0.0
  %1837 = vmatmul.mubr.f32.gmra.mrb[0].mxu0 %v1639
  %v1838 = vpop.f32.mrb[0].mxu0
  %v1839 = vadd.f32 %v1554, %v1838
  %v1840 = vpop.f32.mrb[0].mxu0
  %1841 = vmatprep.mubr.f32.mxu0 0.0
  %1842 = vmatmul.mubr.f32.gmra.mrb[0].mxu0 %v1642
  %v1843 = vpop.f32.mrb[0].mxu0
  %v1844 = vadd.f32 %v1559, %v1843
  %v1845 = vpop.f32.mrb[0].mxu0
  %1846 = vmatprep.mubr.f32.mxu0 0.0
  %1847 = vmatmul.mubr.f32.gmra.mrb[0].mxu0 %v1645
  %v1848 = vpop.f32.mrb[0].mxu0
  %v1849 = vadd.f32 %v1564, %v1848
  %v1850 = vpop.f32.mrb[0].mxu0
  %1851 = vmatprep.mubr.f32.mxu0 0.0
  %1852 = vmatmul.mubr.f32.gmra.mrb[0].mxu0 %v1648
  %v1853 = vpop.f32.mrb[0].mxu0
  %v1854 = vadd.f32 %v1569, %v1853
  %v1855 = vpop.f32.mrb[0].mxu0
  %1856 = vmatprep.mubr.f32.mxu0 0.0
  %1857 = vmatmul.mubr.f32.gmra.mrb[0].mxu0 %v1651
  %v1858 = vpop.f32.mrb[0].mxu0
  %v1859 = vadd.f32 %v1574, %v1858
  %v1860 = vpop.f32.mrb[0].mxu0
  %1861 = vmatprep.mubr.f32.mxu0 0.0
  %1862 = vmatmul.mubr.f32.gmra.mrb[0].mxu0 %v1654
  %v1863 = vpop.f32.mrb[0].mxu0
  %v1864 = vadd.f32 %v1539, %v1863
  %v1865 = vpop.f32.mrb[0].mxu0
  %1866 = vmatprep.mubr.f32.mxu0 0.0
  %1867 = vmatmul.mubr.f32.gmra.mrb[0].mxu0 %v1657
  %v1868 = vpop.f32.mrb[0].mxu0
  %v1869 = vadd.f32 %v1544, %v1868
  %v1870 = vpop.f32.mrb[0].mxu0
  %1871 = vmatprep.mubr.f32.mxu0 0.0
  %1872 = vmatmul.mubr.f32.gmra.mrb[0].mxu0 %v1660
  %v1873 = vpop.f32.mrb[0].mxu0
  %v1874 = vadd.f32 %v1549, %v1873
  %v1875 = vpop.f32.mrb[0].mxu0
  %1876 = vmatprep.mubr.f32.mxu0 0.0
  %1877 = vmatmul.mubr.f32.gmra.mrb[0].mxu0 %v1663
  %v1878 = vpop.f32.mrb[0].mxu0
  %v1879 = vadd.f32 %v1554, %v1878
  %v1880 = vpop.f32.mrb[0].mxu0
  %1881 = vmatprep.mubr.f32.mxu0 0.0
  %1882 = vmatmul.mubr.f32.gmra.mrb[0].mxu0 %v1666
  %v1883 = vpop.f32.mrb[0].mxu0
  %v1884 = vadd.f32 %v1559, %v1883
  %v1885 = vpop.f32.mrb[0].mxu0
  %1886 = vmatprep.mubr.f32.mxu0 0.0
  %1887 = vmatmul.mubr.f32.gmra.mrb[0].mxu0 %v1669
  %v1888 = vpop.f32.mrb[0].mxu0
  %v1889 = vadd.f32 %v1564, %v1888
  %v1890 = vpop.f32.mrb[0].mxu0
  %1891 = vmatprep.mubr.f32.mxu0 0.0
  %1892 = vmatmul.mubr.f32.gmra.mrb[0].mxu0 %v1672
  %v1893 = vpop.f32.mrb[0].mxu0
  %v1894 = vadd.f32 %v1569, %v1893
  %v1895 = vpop.f32.mrb[0].mxu0
  %1896 = vmatprep.mubr.f32.mxu0 0.0
  %1897 = vmatmul.mubr.f32.gmra.mrb[0].mxu0 %v1675
  %v1898 = vpop.f32.mrb[0].mxu0
  %v1899 = vadd.f32 %v1574, %v1898
  %v1900 = vpop.f32.mrb[0].mxu0
  %1901 = vdwg.mxu0
  %v1902 = vld [vmem:[%s1 + $0x130] sm:$0x1]
  %v1903 = vlaneseq
  %v1904 = vshrl.u32 %v1903, 7
  %v1905 = vsub.s32 0, %v1904
  %v1906 = vrot.slane %v1902, %v1905
  %v1907 = vadd.f32 %v1744, %v1906
  %v1908 = vadd.f32 %v1749, %v1906
  %v1909 = vadd.f32 %v1754, %v1906
  %v1910 = vadd.f32 %v1759, %v1906
  %v1911 = vadd.f32 %v1764, %v1906
  %v1912 = vadd.f32 %v1769, %v1906
  %v1913 = vadd.f32 %v1774, %v1906
  %v1914 = vadd.f32 %v1779, %v1906
  %v1915 = vadd.f32 %v1784, %v1906
  %v1916 = vadd.f32 %v1789, %v1906
  %v1917 = vadd.f32 %v1794, %v1906
  %v1918 = vadd.f32 %v1799, %v1906
  %v1919 = vadd.f32 %v1804, %v1906
  %v1920 = vadd.f32 %v1809, %v1906
  %v1921 = vadd.f32 %v1814, %v1906
  %v1922 = vadd.f32 %v1819, %v1906
  %v1923 = vadd.f32 %v1824, %v1906
  %v1924 = vadd.f32 %v1829, %v1906
  %v1925 = vadd.f32 %v1834, %v1906
  %v1926 = vadd.f32 %v1839, %v1906
  %v1927 = vadd.f32 %v1844, %v1906
  %v1928 = vadd.f32 %v1849, %v1906
  %v1929 = vadd.f32 %v1854, %v1906
  %v1930 = vadd.f32 %v1859, %v1906
  %v1931 = vadd.f32 %v1864, %v1906
  %v1932 = vadd.f32 %v1869, %v1906
  %v1933 = vadd.f32 %v1874, %v1906
  %v1934 = vadd.f32 %v1879, %v1906
  %v1935 = vadd.f32 %v1884, %v1906
  %v1936 = vadd.f32 %v1889, %v1906
  %v1937 = vadd.f32 %v1894, %v1906
  %v1938 = vadd.f32 %v1899, %v1906
  %v1939 = vmax.f32 %v1907, 0.0
  %v1940 = vmax.f32 %v1908, 0.0
  %v1941 = vmax.f32 %v1909, 0.0
  %v1942 = vmax.f32 %v1910, 0.0
  %v1943 = vmax.f32 %v1911, 0.0
  %v1944 = vmax.f32 %v1912, 0.0
  %v1945 = vmax.f32 %v1913, 0.0
  %v1946 = vmax.f32 %v1914, 0.0
  %v1947 = vmax.f32 %v1915, 0.0
  %v1948 = vmax.f32 %v1916, 0.0
  %v1949 = vmax.f32 %v1917, 0.0
  %v1950 = vmax.f32 %v1918, 0.0
  %v1951 = vmax.f32 %v1919, 0.0
  %v1952 = vmax.f32 %v1920, 0.0
  %v1953 = vmax.f32 %v1921, 0.0
  %v1954 = vmax.f32 %v1922, 0.0
  %v1955 = vmax.f32 %v1923, 0.0
  %v1956 = vmax.f32 %v1924, 0.0
  %v1957 = vmax.f32 %v1925, 0.0
  %v1958 = vmax.f32 %v1926, 0.0
  %v1959 = vmax.f32 %v1927, 0.0
  %v1960 = vmax.f32 %v1928, 0.0
  %v1961 = vmax.f32 %v1929, 0.0
  %v1962 = vmax.f32 %v1930, 0.0
  %v1963 = vmax.f32 %v1931, 0.0
  %v1964 = vmax.f32 %v1932, 0.0
  %v1965 = vmax.f32 %v1933, 0.0
  %v1966 = vmax.f32 %v1934, 0.0
  %v1967 = vmax.f32 %v1935, 0.0
  %v1968 = vmax.f32 %v1936, 0.0
  %v1969 = vmax.f32 %v1937, 0.0
  %v1970 = vmax.f32 %v1938, 0.0
  %v1971 = vld [vmem:[%s1 + $0x138] sm:$0xff]
  %v1972 = vld [vmem:[%s1 + $0x140] sm:$0xff]
  %v1973 = vld [vmem:[%s1 + $0x148] sm:$0xff]
  %v1974 = vld [vmem:[%s1 + $0x150] sm:$0xff]
  %v1975 = vld [vmem:[%s1 + $0x158] sm:$0xff]
  %v1976 = vld [vmem:[%s1 + $0x160] sm:$0xff]
  %v1977 = vld [vmem:[%s1 + $0x168] sm:$0xff]
  %v1978 = vld [vmem:[%s1 + $0x170] sm:$0xff]
  %1979 = vmatprep.subr.mxu0 0.0
  %1980 = vmatpush1.msra.mxu0 %v1975
  %1981 = vmatprep.subr.mxu0 0.0
  %1982 = vmatpush1.msra.mxu0 %v1976
  %1983 = vmatprep.subr.mxu0 0.0
  %1984 = vmatpush1.msra.mxu0 %v1977
  %1985 = vmatprep.subr.mxu0 0.0
  %1986 = vmatpush1.msra.mxu0 %v1978
  %1987 = vmatprep.subr.mxu0 0.0
  %1988 = vmatpush1.msra.mxu0 0.0
  %1989 = vmatprep.subr.mxu0 0.0
  %1990 = vmatpush1.msra.mxu0 0.0
  %1991 = vmatprep.subr.mxu0 0.0
  %1992 = vmatpush1.msra.mxu0 0.0
  %1993 = vmatprep.subr.mxu0 0.0
  %1994 = vmatpush1.msra.mxu0 0.0
  %1995 = vmatprep.subr.mxu0 0.0
  %1996 = vmatpush1.msra.mxu0 0.0
  %1997 = vmatprep.subr.mxu0 0.0
  %1998 = vmatpush1.msra.mxu0 0.0
  %1999 = vmatprep.subr.mxu0 0.0
  %2000 = vmatpush1.msra.mxu0 0.0
  %2001 = vmatprep.subr.mxu0 0.0
  %2002 = vmatpush1.msra.mxu0 0.0
  %2003 = vmatprep.subr.mxu0 0.0
  %2004 = vmatpush1.msra.mxu0 0.0
  %2005 = vmatprep.subr.mxu0 0.0
  %2006 = vmatpush1.msra.mxu0 0.0
  %2007 = vmatprep.subr.mxu0 0.0
  %2008 = vmatpush1.msra.mxu0 0.0
  %2009 = vmatprep.subr.mxu0 0.0
  %2010 = vmatpush1.msra.mxu0 0.0
  %2011 = vmatprep.subr.mxu0 0.0
  %2012 = vmatpush1.msra.mxu0 0.0
  %2013 = vmatprep.subr.mxu0 0.0
  %2014 = vmatpush1.msra.mxu0 0.0
  %2015 = vmatprep.subr.mxu0 0.0
  %2016 = vmatpush1.msra.mxu0 0.0
  %2017 = vmatprep.subr.mxu0 0.0
  %2018 = vmatpush1.msra.mxu0 0.0
  %2019 = vmatprep.subr.mxu0 0.0
  %2020 = vmatpush1.msra.mxu0 0.0
  %2021 = vmatprep.subr.mxu0 0.0
  %2022 = vmatpush1.msra.mxu0 0.0
  %2023 = vmatprep.subr.mxu0 0.0
  %2024 = vmatpush1.msra.mxu0 0.0
  %2025 = vmatprep.subr.mxu0 0.0
  %2026 = vmatpush1.msra.mxu0 0.0
  %2027 = vmatprep.subr.mxu0 0.0
  %2028 = vmatpush1.msra.mxu0 0.0
  %2029 = vmatprep.subr.mxu0 0.0
  %2030 = vmatpush1.msra.mxu0 0.0
  %2031 = vmatprep.subr.mxu0 0.0
  %2032 = vmatpush1.msra.mxu0 0.0
  %2033 = vmatprep.subr.mxu0 0.0
  %2034 = vmatpush1.msra.mxu0 0.0
  %2035 = vmatprep.subr.mxu0 0.0
  %2036 = vmatpush1.msra.mxu0 0.0
  %2037 = vmatprep.subr.mxu0 0.0
  %2038 = vmatpush1.msra.mxu0 0.0
  %2039 = vmatprep.subr.mxu0 0.0
  %2040 = vmatpush1.msra.mxu0 0.0
  %2041 = vmatprep.subr.mxu0 0.0
  %2042 = vmatpush1.msra.mxu0 0.0
  %2043 = vmatprep.mubr.f32.mxu0 0.0
  %2044 = vmatmul.mubr.f32.gmra.mrb[0].mxu0 %v1582
  %v2045 = vpop.f32.mrb[0].mxu0
  %v2046 = vadd.f32 0.0, %v2045
  %v2047 = vpop.f32.mrb[0].mxu0
  %2048 = vmatprep.mubr.f32.mxu0 0.0
  %2049 = vmatmul.mubr.f32.gmra.mrb[0].mxu0 %v1585
  %v2050 = vpop.f32.mrb[0].mxu0
  %v2051 = vadd.f32 0.0, %v2050
  %v2052 = vpop.f32.mrb[0].mxu0
  %2053 = vmatprep.mubr.f32.mxu0 0.0
  %2054 = vmatmul.mubr.f32.gmra.mrb[0].mxu0 %v1588
  %v2055 = vpop.f32.mrb[0].mxu0
  %v2056 = vadd.f32 0.0, %v2055
  %v2057 = vpop.f32.mrb[0].mxu0
  %2058 = vmatprep.mubr.f32.mxu0 0.0
  %2059 = vmatmul.mubr.f32.gmra.mrb[0].mxu0 %v1591
  %v2060 = vpop.f32.mrb[0].mxu0
  %v2061 = vadd.f32 0.0, %v2060
  %v2062 = vpop.f32.mrb[0].mxu0
  %2063 = vmatprep.mubr.f32.mxu0 0.0
  %2064 = vmatmul.mubr.f32.gmra.mrb[0].mxu0 %v1594
  %v2065 = vpop.f32.mrb[0].mxu0
  %v2066 = vadd.f32 0.0, %v2065
  %v2067 = vpop.f32.mrb[0].mxu0
  %2068 = vmatprep.mubr.f32.mxu0 0.0
  %2069 = vmatmul.mubr.f32.gmra.mrb[0].mxu0 %v1597
  %v2070 = vpop.f32.mrb[0].mxu0
  %v2071 = vadd.f32 0.0, %v2070
  %v2072 = vpop.f32.mrb[0].mxu0
  %2073 = vmatprep.mubr.f32.mxu0 0.0
  %2074 = vmatmul.mubr.f32.gmra.mrb[0].mxu0 %v1600
  %v2075 = vpop.f32.mrb[0].mxu0
  %v2076 = vadd.f32 0.0, %v2075
  %v2077 = vpop.f32.mrb[0].mxu0
  %2078 = vmatprep.mubr.f32.mxu0 0.0
  %2079 = vmatmul.mubr.f32.gmra.mrb[0].mxu0 %v1603
  %v2080 = vpop.f32.mrb[0].mxu0
  %v2081 = vadd.f32 0.0, %v2080
  %v2082 = vpop.f32.mrb[0].mxu0
  %2083 = vmatprep.mubr.f32.mxu0 0.0
  %2084 = vmatmul.mubr.f32.gmra.mrb[0].mxu0 %v1606
  %v2085 = vpop.f32.mrb[0].mxu0
  %v2086 = vadd.f32 0.0, %v2085
  %v2087 = vpop.f32.mrb[0].mxu0
  %2088 = vmatprep.mubr.f32.mxu0 0.0
  %2089 = vmatmul.mubr.f32.gmra.mrb[0].mxu0 %v1609
  %v2090 = vpop.f32.mrb[0].mxu0
  %v2091 = vadd.f32 0.0, %v2090
  %v2092 = vpop.f32.mrb[0].mxu0
  %2093 = vmatprep.mubr.f32.mxu0 0.0
  %2094 = vmatmul.mubr.f32.gmra.mrb[0].mxu0 %v1612
  %v2095 = vpop.f32.mrb[0].mxu0
  %v2096 = vadd.f32 0.0, %v2095
  %v2097 = vpop.f32.mrb[0].mxu0
  %2098 = vmatprep.mubr.f32.mxu0 0.0
  %2099 = vmatmul.mubr.f32.gmra.mrb[0].mxu0 %v1615
  %v2100 = vpop.f32.mrb[0].mxu0
  %v2101 = vadd.f32 0.0, %v2100
  %v2102 = vpop.f32.mrb[0].mxu0
  %2103 = vmatprep.mubr.f32.mxu0 0.0
  %2104 = vmatmul.mubr.f32.gmra.mrb[0].mxu0 %v1618
  %v2105 = vpop.f32.mrb[0].mxu0
  %v2106 = vadd.f32 0.0, %v2105
  %v2107 = vpop.f32.mrb[0].mxu0
  %2108 = vmatprep.mubr.f32.mxu0 0.0
  %2109 = vmatmul.mubr.f32.gmra.mrb[0].mxu0 %v1621
  %v2110 = vpop.f32.mrb[0].mxu0
  %v2111 = vadd.f32 0.0, %v2110
  %v2112 = vpop.f32.mrb[0].mxu0
  %2113 = vmatprep.mubr.f32.mxu0 0.0
  %2114 = vmatmul.mubr.f32.gmra.mrb[0].mxu0 %v1624
  %v2115 = vpop.f32.mrb[0].mxu0
  %v2116 = vadd.f32 0.0, %v2115
  %v2117 = vpop.f32.mrb[0].mxu0
  %2118 = vmatprep.mubr.f32.mxu0 0.0
  %2119 = vmatmul.mubr.f32.gmra.mrb[0].mxu0 %v1627
  %v2120 = vpop.f32.mrb[0].mxu0
  %v2121 = vadd.f32 0.0, %v2120
  %v2122 = vpop.f32.mrb[0].mxu0
  %2123 = vmatprep.mubr.f32.mxu0 0.0
  %2124 = vmatmul.mubr.f32.gmra.mrb[0].mxu0 %v1630
  %v2125 = vpop.f32.mrb[0].mxu0
  %v2126 = vadd.f32 0.0, %v2125
  %v2127 = vpop.f32.mrb[0].mxu0
  %2128 = vmatprep.mubr.f32.mxu0 0.0
  %2129 = vmatmul.mubr.f32.gmra.mrb[0].mxu0 %v1633
  %v2130 = vpop.f32.mrb[0].mxu0
  %v2131 = vadd.f32 0.0, %v2130
  %v2132 = vpop.f32.mrb[0].mxu0
  %2133 = vmatprep.mubr.f32.mxu0 0.0
  %2134 = vmatmul.mubr.f32.gmra.mrb[0].mxu0 %v1636
  %v2135 = vpop.f32.mrb[0].mxu0
  %v2136 = vadd.f32 0.0, %v2135
  %v2137 = vpop.f32.mrb[0].mxu0
  %2138 = vmatprep.mubr.f32.mxu0 0.0
  %2139 = vmatmul.mubr.f32.gmra.mrb[0].mxu0 %v1639
  %v2140 = vpop.f32.mrb[0].mxu0
  %v2141 = vadd.f32 0.0, %v2140
  %v2142 = vpop.f32.mrb[0].mxu0
  %2143 = vmatprep.mubr.f32.mxu0 0.0
  %2144 = vmatmul.mubr.f32.gmra.mrb[0].mxu0 %v1642
  %v2145 = vpop.f32.mrb[0].mxu0
  %v2146 = vadd.f32 0.0, %v2145
  %v2147 = vpop.f32.mrb[0].mxu0
  %2148 = vmatprep.mubr.f32.mxu0 0.0
  %2149 = vmatmul.mubr.f32.gmra.mrb[0].mxu0 %v1645
  %v2150 = vpop.f32.mrb[0].mxu0
  %v2151 = vadd.f32 0.0, %v2150
  %v2152 = vpop.f32.mrb[0].mxu0
  %2153 = vmatprep.mubr.f32.mxu0 0.0
  %2154 = vmatmul.mubr.f32.gmra.mrb[0].mxu0 %v1648
  %v2155 = vpop.f32.mrb[0].mxu0
  %v2156 = vadd.f32 0.0, %v2155
  %v2157 = vpop.f32.mrb[0].mxu0
  %2158 = vmatprep.mubr.f32.mxu0 0.0
  %2159 = vmatmul.mubr.f32.gmra.mrb[0].mxu0 %v1651
  %v2160 = vpop.f32.mrb[0].mxu0
  %v2161 = vadd.f32 0.0, %v2160
  %v2162 = vpop.f32.mrb[0].mxu0
  %2163 = vmatprep.mubr.f32.mxu0 0.0
  %2164 = vmatmul.mubr.f32.gmra.mrb[0].mxu0 %v1654
  %v2165 = vpop.f32.mrb[0].mxu0
  %v2166 = vadd.f32 0.0, %v2165
  %v2167 = vpop.f32.mrb[0].mxu0
  %2168 = vmatprep.mubr.f32.mxu0 0.0
  %2169 = vmatmul.mubr.f32.gmra.mrb[0].mxu0 %v1657
  %v2170 = vpop.f32.mrb[0].mxu0
  %v2171 = vadd.f32 0.0, %v2170
  %v2172 = vpop.f32.mrb[0].mxu0
  %2173 = vmatprep.mubr.f32.mxu0 0.0
  %2174 = vmatmul.mubr.f32.gmra.mrb[0].mxu0 %v1660
  %v2175 = vpop.f32.mrb[0].mxu0
  %v2176 = vadd.f32 0.0, %v2175
  %v2177 = vpop.f32.mrb[0].mxu0
  %2178 = vmatprep.mubr.f32.mxu0 0.0
  %2179 = vmatmul.mubr.f32.gmra.mrb[0].mxu0 %v1663
  %v2180 = vpop.f32.mrb[0].mxu0
  %v2181 = vadd.f32 0.0, %v2180
  %v2182 = vpop.f32.mrb[0].mxu0
  %2183 = vmatprep.mubr.f32.mxu0 0.0
  %2184 = vmatmul.mubr.f32.gmra.mrb[0].mxu0 %v1666
  %v2185 = vpop.f32.mrb[0].mxu0
  %v2186 = vadd.f32 0.0, %v2185
  %v2187 = vpop.f32.mrb[0].mxu0
  %2188 = vmatprep.mubr.f32.mxu0 0.0
  %2189 = vmatmul.mubr.f32.gmra.mrb[0].mxu0 %v1669
  %v2190 = vpop.f32.mrb[0].mxu0
  %v2191 = vadd.f32 0.0, %v2190
  %v2192 = vpop.f32.mrb[0].mxu0
  %2193 = vmatprep.mubr.f32.mxu0 0.0
  %2194 = vmatmul.mubr.f32.gmra.mrb[0].mxu0 %v1672
  %v2195 = vpop.f32.mrb[0].mxu0
  %v2196 = vadd.f32 0.0, %v2195
  %v2197 = vpop.f32.mrb[0].mxu0
  %2198 = vmatprep.mubr.f32.mxu0 0.0
  %2199 = vmatmul.mubr.f32.gmra.mrb[0].mxu0 %v1675
  %v2200 = vpop.f32.mrb[0].mxu0
  %v2201 = vadd.f32 0.0, %v2200
  %v2202 = vpop.f32.mrb[0].mxu0
  %2203 = vdwg.mxu0
  %v2205 = vsel %vm418, %v1939, 0
  %v2208 = vsel %vm418, %v1940, 0
  %v2211 = vsel %vm418, %v1941, 0
  %v2214 = vsel %vm418, %v1942, 0
  %v2217 = vsel %vm418, %v1943, 0
  %v2220 = vsel %vm418, %v1944, 0
  %v2223 = vsel %vm418, %v1945, 0
  %v2226 = vsel %vm418, %v1946, 0
  %v2229 = vsel %vm418, %v1947, 0
  %v2232 = vsel %vm418, %v1948, 0
  %v2235 = vsel %vm418, %v1949, 0
  %v2238 = vsel %vm418, %v1950, 0
  %v2241 = vsel %vm418, %v1951, 0
  %v2244 = vsel %vm418, %v1952, 0
  %v2247 = vsel %vm418, %v1953, 0
  %v2250 = vsel %vm418, %v1954, 0
  %v2253 = vsel %vm418, %v1955, 0
  %v2256 = vsel %vm418, %v1956, 0
  %v2259 = vsel %vm418, %v1957, 0
  %v2262 = vsel %vm418, %v1958, 0
  %v2265 = vsel %vm418, %v1959, 0
  %v2268 = vsel %vm418, %v1960, 0
  %v2271 = vsel %vm418, %v1961, 0
  %v2274 = vsel %vm418, %v1962, 0
  %v2277 = vsel %vm418, %v1963, 0
  %v2280 = vsel %vm418, %v1964, 0
  %v2283 = vsel %vm418, %v1965, 0
  %v2286 = vsel %vm418, %v1966, 0
  %v2289 = vsel %vm418, %v1967, 0
  %v2292 = vsel %vm418, %v1968, 0
  %v2295 = vsel %vm418, %v1969, 0
  %v2298 = vsel %vm418, %v1970, 0
  %2300 = vmatprep.subr.mxu0 0.0
  %2301 = vmatpush1.msra.mxu0 %v1971
  %2302 = vmatprep.subr.mxu0 0.0
  %2303 = vmatpush1.msra.mxu0 %v1972
  %2304 = vmatprep.subr.mxu0 0.0
  %2305 = vmatpush1.msra.mxu0 %v1973
  %2306 = vmatprep.subr.mxu0 0.0
  %2307 = vmatpush1.msra.mxu0 %v1974
  %2308 = vmatprep.subr.mxu0 0.0
  %2309 = vmatpush1.msra.mxu0 0.0
  %2310 = vmatprep.subr.mxu0 0.0
  %2311 = vmatpush1.msra.mxu0 0.0
  %2312 = vmatprep.subr.mxu0 0.0
  %2313 = vmatpush1.msra.mxu0 0.0
  %2314 = vmatprep.subr.mxu0 0.0
  %2315 = vmatpush1.msra.mxu0 0.0
  %2316 = vmatprep.subr.mxu0 0.0
  %2317 = vmatpush1.msra.mxu0 0.0
  %2318 = vmatprep.subr.mxu0 0.0
  %2319 = vmatpush1.msra.mxu0 0.0
  %2320 = vmatprep.subr.mxu0 0.0
  %2321 = vmatpush1.msra.mxu0 0.0
  %2322 = vmatprep.subr.mxu0 0.0
  %2323 = vmatpush1.msra.mxu0 0.0
  %2324 = vmatprep.subr.mxu0 0.0
  %2325 = vmatpush1.msra.mxu0 0.0
  %2326 = vmatprep.subr.mxu0 0.0
  %2327 = vmatpush1.msra.mxu0 0.0
  %2328 = vmatprep.subr.mxu0 0.0
  %2329 = vmatpush1.msra.mxu0 0.0
  %2330 = vmatprep.subr.mxu0 0.0
  %2331 = vmatpush1.msra.mxu0 0.0
  %2332 = vmatprep.subr.mxu0 0.0
  %2333 = vmatpush1.msra.mxu0 0.0
  %2334 = vmatprep.subr.mxu0 0.0
  %2335 = vmatpush1.msra.mxu0 0.0
  %2336 = vmatprep.subr.mxu0 0.0
  %2337 = vmatpush1.msra.mxu0 0.0
  %2338 = vmatprep.subr.mxu0 0.0
  %2339 = vmatpush1.msra.mxu0 0.0
  %2340 = vmatprep.subr.mxu0 0.0
  %2341 = vmatpush1.msra.mxu0 0.0
  %2342 = vmatprep.subr.mxu0 0.0
  %2343 = vmatpush1.msra.mxu0 0.0
  %2344 = vmatprep.subr.mxu0 0.0
  %2345 = vmatpush1.msra.mxu0 0.0
  %2346 = vmatprep.subr.mxu0 0.0
  %2347 = vmatpush1.msra.mxu0 0.0
  %2348 = vmatprep.subr.mxu0 0.0
  %2349 = vmatpush1.msra.mxu0 0.0
  %2350 = vmatprep.subr.mxu0 0.0
  %2351 = vmatpush1.msra.mxu0 0.0
  %2352 = vmatprep.subr.mxu0 0.0
  %2353 = vmatpush1.msra.mxu0 0.0
  %2354 = vmatprep.subr.mxu0 0.0
  %2355 = vmatpush1.msra.mxu0 0.0
  %2356 = vmatprep.subr.mxu0 0.0
  %2357 = vmatpush1.msra.mxu0 0.0
  %2358 = vmatprep.subr.mxu0 0.0
  %2359 = vmatpush1.msra.mxu0 0.0
  %2360 = vmatprep.subr.mxu0 0.0
  %2361 = vmatpush1.msra.mxu0 0.0
  %2362 = vmatprep.subr.mxu0 0.0
  %2363 = vmatpush1.msra.mxu0 0.0
  %2364 = vmatprep.mubr.f32.mxu0 0.0
  %2365 = vmatmul.mubr.f32.gmra.mrb[0].mxu0 %v2205
  %v2366 = vpop.f32.mrb[0].mxu0
  %v2367 = vadd.f32 %v2046, %v2366
  %v2368 = vpop.f32.mrb[0].mxu0
  %2369 = vmatprep.mubr.f32.mxu0 0.0
  %2370 = vmatmul.mubr.f32.gmra.mrb[0].mxu0 %v2208
  %v2371 = vpop.f32.mrb[0].mxu0
  %v2372 = vadd.f32 %v2051, %v2371
  %v2373 = vpop.f32.mrb[0].mxu0
  %2374 = vmatprep.mubr.f32.mxu0 0.0
  %2375 = vmatmul.mubr.f32.gmra.mrb[0].mxu0 %v2211
  %v2376 = vpop.f32.mrb[0].mxu0
  %v2377 = vadd.f32 %v2056, %v2376
  %v2378 = vpop.f32.mrb[0].mxu0
  %2379 = vmatprep.mubr.f32.mxu0 0.0
  %2380 = vmatmul.mubr.f32.gmra.mrb[0].mxu0 %v2214
  %v2381 = vpop.f32.mrb[0].mxu0
  %v2382 = vadd.f32 %v2061, %v2381
  %v2383 = vpop.f32.mrb[0].mxu0
  %2384 = vmatprep.mubr.f32.mxu0 0.0
  %2385 = vmatmul.mubr.f32.gmra.mrb[0].mxu0 %v2217
  %v2386 = vpop.f32.mrb[0].mxu0
  %v2387 = vadd.f32 %v2066, %v2386
  %v2388 = vpop.f32.mrb[0].mxu0
  %2389 = vmatprep.mubr.f32.mxu0 0.0
  %2390 = vmatmul.mubr.f32.gmra.mrb[0].mxu0 %v2220
  %v2391 = vpop.f32.mrb[0].mxu0
  %v2392 = vadd.f32 %v2071, %v2391
  %v2393 = vpop.f32.mrb[0].mxu0
  %2394 = vmatprep.mubr.f32.mxu0 0.0
  %2395 = vmatmul.mubr.f32.gmra.mrb[0].mxu0 %v2223
  %v2396 = vpop.f32.mrb[0].mxu0
  %v2397 = vadd.f32 %v2076, %v2396
  %v2398 = vpop.f32.mrb[0].mxu0
  %2399 = vmatprep.mubr.f32.mxu0 0.0
  %2400 = vmatmul.mubr.f32.gmra.mrb[0].mxu0 %v2226
  %v2401 = vpop.f32.mrb[0].mxu0
  %v2402 = vadd.f32 %v2081, %v2401
  %v2403 = vpop.f32.mrb[0].mxu0
  %2404 = vmatprep.mubr.f32.mxu0 0.0
  %2405 = vmatmul.mubr.f32.gmra.mrb[0].mxu0 %v2229
  %v2406 = vpop.f32.mrb[0].mxu0
  %v2407 = vadd.f32 %v2086, %v2406
  %v2408 = vpop.f32.mrb[0].mxu0
  %2409 = vmatprep.mubr.f32.mxu0 0.0
  %2410 = vmatmul.mubr.f32.gmra.mrb[0].mxu0 %v2232
  %v2411 = vpop.f32.mrb[0].mxu0
  %v2412 = vadd.f32 %v2091, %v2411
  %v2413 = vpop.f32.mrb[0].mxu0
  %2414 = vmatprep.mubr.f32.mxu0 0.0
  %2415 = vmatmul.mubr.f32.gmra.mrb[0].mxu0 %v2235
  %v2416 = vpop.f32.mrb[0].mxu0
  %v2417 = vadd.f32 %v2096, %v2416
  %v2418 = vpop.f32.mrb[0].mxu0
  %2419 = vmatprep.mubr.f32.mxu0 0.0
  %2420 = vmatmul.mubr.f32.gmra.mrb[0].mxu0 %v2238
  %v2421 = vpop.f32.mrb[0].mxu0
  %v2422 = vadd.f32 %v2101, %v2421
  %v2423 = vpop.f32.mrb[0].mxu0
  %2424 = vmatprep.mubr.f32.mxu0 0.0
  %2425 = vmatmul.mubr.f32.gmra.mrb[0].mxu0 %v2241
  %v2426 = vpop.f32.mrb[0].mxu0
  %v2427 = vadd.f32 %v2106, %v2426
  %v2428 = vpop.f32.mrb[0].mxu0
  %2429 = vmatprep.mubr.f32.mxu0 0.0
  %2430 = vmatmul.mubr.f32.gmra.mrb[0].mxu0 %v2244
  %v2431 = vpop.f32.mrb[0].mxu0
  %v2432 = vadd.f32 %v2111, %v2431
  %v2433 = vpop.f32.mrb[0].mxu0
  %2434 = vmatprep.mubr.f32.mxu0 0.0
  %2435 = vmatmul.mubr.f32.gmra.mrb[0].mxu0 %v2247
  %v2436 = vpop.f32.mrb[0].mxu0
  %v2437 = vadd.f32 %v2116, %v2436
  %v2438 = vpop.f32.mrb[0].mxu0
  %2439 = vmatprep.mubr.f32.mxu0 0.0
  %2440 = vmatmul.mubr.f32.gmra.mrb[0].mxu0 %v2250
  %v2441 = vpop.f32.mrb[0].mxu0
  %v2442 = vadd.f32 %v2121, %v2441
  %v2443 = vpop.f32.mrb[0].mxu0
  %2444 = vmatprep.mubr.f32.mxu0 0.0
  %2445 = vmatmul.mubr.f32.gmra.mrb[0].mxu0 %v2253
  %v2446 = vpop.f32.mrb[0].mxu0
  %v2447 = vadd.f32 %v2126, %v2446
  %v2448 = vpop.f32.mrb[0].mxu0
  %2449 = vmatprep.mubr.f32.mxu0 0.0
  %2450 = vmatmul.mubr.f32.gmra.mrb[0].mxu0 %v2256
  %v2451 = vpop.f32.mrb[0].mxu0
  %v2452 = vadd.f32 %v2131, %v2451
  %v2453 = vpop.f32.mrb[0].mxu0
  %2454 = vmatprep.mubr.f32.mxu0 0.0
  %2455 = vmatmul.mubr.f32.gmra.mrb[0].mxu0 %v2259
  %v2456 = vpop.f32.mrb[0].mxu0
  %v2457 = vadd.f32 %v2136, %v2456
  %v2458 = vpop.f32.mrb[0].mxu0
  %2459 = vmatprep.mubr.f32.mxu0 0.0
  %2460 = vmatmul.mubr.f32.gmra.mrb[0].mxu0 %v2262
  %v2461 = vpop.f32.mrb[0].mxu0
  %v2462 = vadd.f32 %v2141, %v2461
  %v2463 = vpop.f32.mrb[0].mxu0
  %2464 = vmatprep.mubr.f32.mxu0 0.0
  %2465 = vmatmul.mubr.f32.gmra.mrb[0].mxu0 %v2265
  %v2466 = vpop.f32.mrb[0].mxu0
  %v2467 = vadd.f32 %v2146, %v2466
  %v2468 = vpop.f32.mrb[0].mxu0
  %2469 = vmatprep.mubr.f32.mxu0 0.0
  %2470 = vmatmul.mubr.f32.gmra.mrb[0].mxu0 %v2268
  %v2471 = vpop.f32.mrb[0].mxu0
  %v2472 = vadd.f32 %v2151, %v2471
  %v2473 = vpop.f32.mrb[0].mxu0
  %2474 = vmatprep.mubr.f32.mxu0 0.0
  %2475 = vmatmul.mubr.f32.gmra.mrb[0].mxu0 %v2271
  %v2476 = vpop.f32.mrb[0].mxu0
  %v2477 = vadd.f32 %v2156, %v2476
  %v2478 = vpop.f32.mrb[0].mxu0
  %2479 = vmatprep.mubr.f32.mxu0 0.0
  %2480 = vmatmul.mubr.f32.gmra.mrb[0].mxu0 %v2274
  %v2481 = vpop.f32.mrb[0].mxu0
  %v2482 = vadd.f32 %v2161, %v2481
  %v2483 = vpop.f32.mrb[0].mxu0
  %2484 = vmatprep.mubr.f32.mxu0 0.0
  %2485 = vmatmul.mubr.f32.gmra.mrb[0].mxu0 %v2277
  %v2486 = vpop.f32.mrb[0].mxu0
  %v2487 = vadd.f32 %v2166, %v2486
  %v2488 = vpop.f32.mrb[0].mxu0
  %2489 = vmatprep.mubr.f32.mxu0 0.0
  %2490 = vmatmul.mubr.f32.gmra.mrb[0].mxu0 %v2280
  %v2491 = vpop.f32.mrb[0].mxu0
  %v2492 = vadd.f32 %v2171, %v2491
  %v2493 = vpop.f32.mrb[0].mxu0
  %2494 = vmatprep.mubr.f32.mxu0 0.0
  %2495 = vmatmul.mubr.f32.gmra.mrb[0].mxu0 %v2283
  %v2496 = vpop.f32.mrb[0].mxu0
  %v2497 = vadd.f32 %v2176, %v2496
  %v2498 = vpop.f32.mrb[0].mxu0
  %2499 = vmatprep.mubr.f32.mxu0 0.0
  %2500 = vmatmul.mubr.f32.gmra.mrb[0].mxu0 %v2286
  %v2501 = vpop.f32.mrb[0].mxu0
  %v2502 = vadd.f32 %v2181, %v2501
  %v2503 = vpop.f32.mrb[0].mxu0
  %2504 = vmatprep.mubr.f32.mxu0 0.0
  %2505 = vmatmul.mubr.f32.gmra.mrb[0].mxu0 %v2289
  %v2506 = vpop.f32.mrb[0].mxu0
  %v2507 = vadd.f32 %v2186, %v2506
  %v2508 = vpop.f32.mrb[0].mxu0
  %2509 = vmatprep.mubr.f32.mxu0 0.0
  %2510 = vmatmul.mubr.f32.gmra.mrb[0].mxu0 %v2292
  %v2511 = vpop.f32.mrb[0].mxu0
  %v2512 = vadd.f32 %v2191, %v2511
  %v2513 = vpop.f32.mrb[0].mxu0
  %2514 = vmatprep.mubr.f32.mxu0 0.0
  %2515 = vmatmul.mubr.f32.gmra.mrb[0].mxu0 %v2295
  %v2516 = vpop.f32.mrb[0].mxu0
  %v2517 = vadd.f32 %v2196, %v2516
  %v2518 = vpop.f32.mrb[0].mxu0
  %2519 = vmatprep.mubr.f32.mxu0 0.0
  %2520 = vmatmul.mubr.f32.gmra.mrb[0].mxu0 %v2298
  %v2521 = vpop.f32.mrb[0].mxu0
  %v2522 = vadd.f32 %v2201, %v2521
  %v2523 = vpop.f32.mrb[0].mxu0
  %2524 = vdwg.mxu0
  %v2525 = vld [vmem:[%s1 + $0x178] sm:$0x1]
  %v2526 = vlaneseq
  %v2527 = vshrl.u32 %v2526, 7
  %v2528 = vsub.s32 0, %v2527
  %v2529 = vrot.slane %v2525, %v2528
  %v2530 = vadd.f32 %v2367, %v2529
  %v2531 = vadd.f32 %v2372, %v2529
  %v2532 = vadd.f32 %v2377, %v2529
  %v2533 = vadd.f32 %v2382, %v2529
  %v2534 = vadd.f32 %v2387, %v2529
  %v2535 = vadd.f32 %v2392, %v2529
  %v2536 = vadd.f32 %v2397, %v2529
  %v2537 = vadd.f32 %v2402, %v2529
  %v2538 = vadd.f32 %v2407, %v2529
  %v2539 = vadd.f32 %v2412, %v2529
  %v2540 = vadd.f32 %v2417, %v2529
  %v2541 = vadd.f32 %v2422, %v2529
  %v2542 = vadd.f32 %v2427, %v2529
  %v2543 = vadd.f32 %v2432, %v2529
  %v2544 = vadd.f32 %v2437, %v2529
  %v2545 = vadd.f32 %v2442, %v2529
  %v2546 = vadd.f32 %v2447, %v2529
  %v2547 = vadd.f32 %v2452, %v2529
  %v2548 = vadd.f32 %v2457, %v2529
  %v2549 = vadd.f32 %v2462, %v2529
  %v2550 = vadd.f32 %v2467, %v2529
  %v2551 = vadd.f32 %v2472, %v2529
  %v2552 = vadd.f32 %v2477, %v2529
  %v2553 = vadd.f32 %v2482, %v2529
  %v2554 = vadd.f32 %v2487, %v2529
  %v2555 = vadd.f32 %v2492, %v2529
  %v2556 = vadd.f32 %v2497, %v2529
  %v2557 = vadd.f32 %v2502, %v2529
  %v2558 = vadd.f32 %v2507, %v2529
  %v2559 = vadd.f32 %v2512, %v2529
  %v2560 = vadd.f32 %v2517, %v2529
  %v2561 = vadd.f32 %v2522, %v2529
  %vm2562 = vcmask 171008
  %2563 = vst.msk [vmem:[%s2] sm:$0xff] %vm2562, %v2530
  %2564 = vst.msk [vmem:[%s2 + $0x8] sm:$0xff] %vm2562, %v2531
  %2565 = vst.msk [vmem:[%s2 + $0x10] sm:$0xff] %vm2562, %v2532
  %2566 = vst.msk [vmem:[%s2 + $0x18] sm:$0xff] %vm2562, %v2533
  %2567 = vst.msk [vmem:[%s2 + $0x20] sm:$0xff] %vm2562, %v2534
  %2568 = vst.msk [vmem:[%s2 + $0x28] sm:$0xff] %vm2562, %v2535
  %2569 = vst.msk [vmem:[%s2 + $0x30] sm:$0xff] %vm2562, %v2536
  %2570 = vst.msk [vmem:[%s2 + $0x38] sm:$0xff] %vm2562, %v2537
  %2571 = vst.msk [vmem:[%s2 + $0x40] sm:$0xff] %vm2562, %v2538
  %2572 = vst.msk [vmem:[%s2 + $0x48] sm:$0xff] %vm2562, %v2539
  %2573 = vst.msk [vmem:[%s2 + $0x50] sm:$0xff] %vm2562, %v2540
  %2574 = vst.msk [vmem:[%s2 + $0x58] sm:$0xff] %vm2562, %v2541
  %2575 = vst.msk [vmem:[%s2 + $0x60] sm:$0xff] %vm2562, %v2542
  %2576 = vst.msk [vmem:[%s2 + $0x68] sm:$0xff] %vm2562, %v2543
  %2577 = vst.msk [vmem:[%s2 + $0x70] sm:$0xff] %vm2562, %v2544
  %2578 = vst.msk [vmem:[%s2 + $0x78] sm:$0xff] %vm2562, %v2545
  %2579 = vst.msk [vmem:[%s2 + $0x80] sm:$0xff] %vm2562, %v2546
  %2580 = vst.msk [vmem:[%s2 + $0x88] sm:$0xff] %vm2562, %v2547
  %2581 = vst.msk [vmem:[%s2 + $0x90] sm:$0xff] %vm2562, %v2548
  %2582 = vst.msk [vmem:[%s2 + $0x98] sm:$0xff] %vm2562, %v2549
  %2583 = vst.msk [vmem:[%s2 + $0xa0] sm:$0xff] %vm2562, %v2550
  %2584 = vst.msk [vmem:[%s2 + $0xa8] sm:$0xff] %vm2562, %v2551
  %2585 = vst.msk [vmem:[%s2 + $0xb0] sm:$0xff] %vm2562, %v2552
  %2586 = vst.msk [vmem:[%s2 + $0xb8] sm:$0xff] %vm2562, %v2553
  %2587 = vst.msk [vmem:[%s2 + $0xc0] sm:$0xff] %vm2562, %v2554
  %2588 = vst.msk [vmem:[%s2 + $0xc8] sm:$0xff] %vm2562, %v2555
  %2589 = vst.msk [vmem:[%s2 + $0xd0] sm:$0xff] %vm2562, %v2556
  %2590 = vst.msk [vmem:[%s2 + $0xd8] sm:$0xff] %vm2562, %v2557
  %2591 = vst.msk [vmem:[%s2 + $0xe0] sm:$0xff] %vm2562, %v2558
  %2592 = vst.msk [vmem:[%s2 + $0xe8] sm:$0xff] %vm2562, %v2559
  %2593 = vst.msk [vmem:[%s2 + $0xf0] sm:$0xff] %vm2562, %v2560
  %2594 = vst.msk [vmem:[%s2 + $0xf8] sm:$0xff] %vm2562, %v2561
  // Predicated region
  $region10: #{fwd.1} parent=0 // pred_check
    _
  $region11: #{fwd.1} parent=0 // pred_check_branch
    %2596 = sbr.rel (0) target = $region13
  $region12: #{fwd.1} parent=0 // pred_region
    _
  $region13: #{fwd.1} parent=0 // pred_fallthru
    _
  // Predicated region
  $region14: #{fwd.1} parent=0 // pred_check
    _
  $region15: #{fwd.1} parent=0 // pred_check_branch
    %2598 = sbr.rel (0) target = $region17
  $region16: #{fwd.1} parent=0 // pred_region
    _
  $region17: #{fwd.1} parent=0 // pred_fallthru
    _
  // Predicated region
  $region18: #{fwd.1} parent=0 // pred_check
    _
  $region19: #{fwd.1} parent=0 // pred_check_branch
    %2600 = sbr.rel (0) target = $region21
  $region20: #{fwd.1} parent=0 // pred_region
    _
  $region21: #{fwd.1} parent=0 // pred_fallthru
    _
  // Predicated region
  $region22: #{fwd.1} parent=0 // pred_check
    _
  $region23: #{fwd.1} parent=0 // pred_check_branch
    %2602 = sbr.rel (0) target = $region25
  $region24: #{fwd.1} parent=0 // pred_region
    _
  $region25: #{fwd.1} parent=0 // pred_fallthru
    _

</llo_original>
